<compile_context>
chip_gen: v7x
topology: tpu7x:2x2x1
jax: 0.10.0
libtpu: 0.0.40
codegen_flags: <defaults>
</compile_context>

<pallas_src>
import functools
import math

import jax
import jax.numpy as jnp
from jax.experimental import pallas as pl
from jax.experimental.pallas import tpu as pltpu


_CONV_CFG = ((32, 8, 4), (64, 4, 2), (64, 3, 1))   # (out_ch, kernel, stride)


def _round_up(n, m):
    return ((n + m - 1) // m) * m


def _conv_out(n, k, s):
    return (n - k) // s + 1


# ----------------------------------------------------------------------------
# Fused kernel: conv1 GEMM -> conv2 (16 block-GEMMs) -> conv3 (9 block-GEMMs)
# -> head GEMM, all with bias+ReLU, everything resident in VMEM.
# ----------------------------------------------------------------------------
def _cnn_fused_kernel(p1e_ref, w1_ref, b1_ref, w2_ref, b2_ref,
                      w3_ref, b3_ref, w4_ref, b4_ref, o_ref):
    B = o_ref.shape[0]
    n_k2 = w2_ref.shape[0]                       # conv2 kernel positions (k2*k2)
    n_k3 = w3_ref.shape[0]                       # conv3 kernel positions (k3*k3)
    blk = p1e_ref.shape[0] // n_k2               # rows per conv2 kernel-position block

    # conv1 (+ReLU): one MXU GEMM over the expanded im2col matrix.
    a1 = jnp.dot(p1e_ref[...], w1_ref[...], preferred_element_type=jnp.float32)
    a1 = jnp.maximum(a1 + b1_ref[...], 0.0)                      # (n_k2*blk, 32) f32

    # conv2 (+ReLU): one GEMM per kernel position; each consumes a contiguous
    # row block of a1 (rows inside a block are ordered (h2, w2, b)).
    acc2 = jnp.zeros((blk, w2_ref.shape[2]), jnp.float32)
    for p in range(n_k2):
        lhs = a1[p * blk:(p + 1) * blk, :].astype(jnp.bfloat16)
        acc2 = acc2 + jnp.dot(lhs, w2_ref[p], preferred_element_type=jnp.float32)
    a2 = jnp.maximum(acc2 + b2_ref[...], 0.0)                    # (blk, 64) f32

    # conv3 (+ReLU): output spatial is 1x1, so kernel position q reads exactly
    # the B rows of a2 belonging to conv2-output pixel q.
    acc3 = jnp.zeros((B, w3_ref.shape[2]), jnp.float32)
    for q in range(n_k3):
        lhs = a2[q * B:(q + 1) * B, :].astype(jnp.bfloat16)
        acc3 = acc3 + jnp.dot(lhs, w3_ref[q], preferred_element_type=jnp.float32)
    a3 = jnp.maximum(acc3 + b3_ref[...], 0.0)                    # (B, 64) f32

    # head Linear (+ReLU)
    out = jnp.dot(a3.astype(jnp.bfloat16), w4_ref[...],
                  preferred_element_type=jnp.float32)
    o_ref[...] = jnp.maximum(out + b4_ref[...], 0.0)


# ----------------------------------------------------------------------------
# Wrapper-side (XLA) patch construction: pure data movement, no compute.
# ----------------------------------------------------------------------------
def _build_expanded_patches(obs, meta):
    """obs (B,C,H,W) -> (k2*k2*blk_rows, k1*k1*C) bf16 expanded conv1 im2col.

    Row layout: 16 blocks (one per conv2 kernel offset (i,j)); inside a block,
    row (h2*W2 + w2)*B + b holds the conv1 patch of conv1-output pixel
    (b, s2*h2 + i, s2*w2 + j) -- exactly the LHS rows the in-kernel conv2
    reduction needs as contiguous slabs."""
    (_, k1, s1), (_, k2, s2), _ = _CONV_CFG
    B = obs.shape[0]
    H1, W1, H2, W2 = meta["H1"], meta["W1"], meta["H2"], meta["W2"]
    blk_rows = _round_up(B * H2 * W2, 8)

    x = jnp.transpose(obs, (0, 2, 3, 1))                         # NHWC
    cols = [x[:, di:di + s1 * (H1 - 1) + 1:s1, dj:dj + s1 * (W1 - 1) + 1:s1, :]
            for di in range(k1) for dj in range(k1)]
    p1 = jnp.concatenate(cols, axis=-1)                          # (B, H1, W1, k1*k1*C)
    feat_dim = p1.shape[-1]

    blocks = []
    for i in range(k2):
        for j in range(k2):
            blk = p1[:, i:i + s2 * (H2 - 1) + 1:s2, j:j + s2 * (W2 - 1) + 1:s2, :]
            blk = jnp.transpose(blk, (1, 2, 0, 3)).reshape(H2 * W2 * B, feat_dim)
            if blk_rows != H2 * W2 * B:
                blk = jnp.pad(blk, ((0, blk_rows - H2 * W2 * B), (0, 0)))
            blocks.append(blk)
    p1e = jnp.concatenate(blocks, axis=0)                        # (16*blk_rows, k1*k1*C)
    return p1e.astype(jnp.bfloat16), blk_rows


# ----------------------------------------------------------------------------
# Parameter init + one-time packing (kaiming_normal_, relu; biases zero)
# ----------------------------------------------------------------------------
def _kaiming_normal(key, shape, fan_in):
    return jax.random.normal(key, shape, dtype=jnp.float32) * math.sqrt(2.0 / fan_in)


def init_cnn_params(key, input_shape, feat_size):
    in_ch, H, W = input_shape
    (o1, k1, s1), (o2, k2, s2), (o3, k3, s3) = _CONV_CFG
    H1, W1 = _conv_out(H, k1, s1), _conv_out(W, k1, s1)
    H2, W2 = _conv_out(H1, k2, s2), _conv_out(W1, k2, s2)
    H3, W3 = _conv_out(H2, k3, s3), _conv_out(W2, k3, s3)
    assert min(H1, W1, H2, W2, H3, W3) >= 1, "input too small for the conv stack"
    # Fused kernel is specialised to the case where conv3 collapses spatial dims.
    assert (H3, W3) == (1, 1), "fused kernel expects conv3 output spatial 1x1"
    # TODO(synk): generalise the conv3 stage to H3*W3 > 1 by applying the same
    # overlapping-block row expansion used for conv2 (one more level).

    ks = jax.random.split(key, 4)
    w1 = _kaiming_normal(ks[0], (o1, in_ch, k1, k1), in_ch * k1 * k1)
    w2 = _kaiming_normal(ks[1], (o2, o1, k2, k2), o1 * k2 * k2)
    w3 = _kaiming_normal(ks[2], (o3, o2, k3, k3), o2 * k3 * k3)
    conv_out_size = o3 * H3 * W3                 # mirrors CNN.get_conv_out_size()
    w4 = _kaiming_normal(ks[3], (feat_size, conv_out_size), conv_out_size)
    b1 = jnp.zeros((o1,), jnp.float32)
    b2 = jnp.zeros((o2,), jnp.float32)
    b3 = jnp.zeros((o3,), jnp.float32)
    b4 = jnp.zeros((feat_size,), jnp.float32)

    # bf16-rounded master copies so kernel and XLA reference share weights.
    w1r, w2r, w3r, w4r = (w.astype(jnp.bfloat16).astype(jnp.float32)
                          for w in (w1, w2, w3, w4))

    params = {
        # Packed matmul-ready weights, feature order (kh, kw, cin), real sizes.
        "w1": jnp.transpose(w1r, (2, 3, 1, 0)).reshape(k1 * k1 * in_ch, o1).astype(jnp.bfloat16),
        "b1": b1.reshape(1, o1),
        "w2": jnp.transpose(w2r, (2, 3, 1, 0)).reshape(k2 * k2, o1, o2).astype(jnp.bfloat16),
        "b2": b2.reshape(1, o2),
        "w3": jnp.transpose(w3r, (2, 3, 1, 0)).reshape(k3 * k3, o2, o3).astype(jnp.bfloat16),
        "b3": b3.reshape(1, o3),
        # Head consumes conv3's (B, o3) flatten; with 1x1 spatial, PyTorch's
        # NCHW .view(B, -1) order is exactly the channel order.
        "w4": w4r.T.astype(jnp.bfloat16),
        "b4": b4.reshape(1, feat_size),
        "meta": {"H1": H1, "W1": W1, "H2": H2, "W2": W2,
                 "feat": feat_size, "conv_out_size": conv_out_size},
        # Plain-XLA reference (same bf16-rounded weights, f32 activations).
        "ref": {"convs": [(w1r, b1, s1), (w2r, b2, s2), (w3r, b3, s3)],
                "head": (w4r, b4)},
    }
    return params


# ----------------------------------------------------------------------------
# Forward pass (equivalent to CNN.forward)
# ----------------------------------------------------------------------------
def cnn_forward(params, obs):
    meta = params["meta"]
    (o1, _, _), (o2, k2, _), (o3, k3, _) = _CONV_CFG
    B = obs.shape[0]
    feat = meta["feat"]

    p1e, blk_rows = _build_expanded_patches(obs, meta)

    flops = 2 * (p1e.shape[0] * p1e.shape[1] * o1
                 + k2 * k2 * blk_rows * o1 * o2
                 + k3 * k3 * B * o2 * o3
                 + B * o3 * feat)
    operands = (p1e, params["w1"], params["b1"], params["w2"], params["b2"],
                params["w3"], params["b3"], params["w4"], params["b4"])
    in_bytes = sum(int(a.size) * a.dtype.itemsize for a in operands)

    vmem = functools.partial(pl.BlockSpec, memory_space=pltpu.MemorySpace.VMEM)
    # TODO(synk): at training-sized batches, add a leading "parallel" grid axis
    # over row-blocks so the second TensorCore on v7x is used.
    return pl.pallas_call(
        _cnn_fused_kernel,
        out_shape=jax.ShapeDtypeStruct((B, feat), jnp.float32),
        in_specs=[vmem() for _ in range(len(operands))],
        out_specs=vmem(),
        cost_estimate=pl.CostEstimate(flops=flops, transcendentals=0,
                                      bytes_accessed=in_bytes + B * feat * 4),
    )(*operands)


# ----------------------------------------------------------------------------
# Plain-XLA reference (for validation only)
# ----------------------------------------------------------------------------
def _reference_forward(ref_params, obs):
    x = obs
    for w, b, s in ref_params["convs"]:
        x = jax.lax.conv_general_dilated(
            x, w, window_strides=(s, s), padding="VALID",
            dimension_numbers=("NCHW", "OIHW", "NCHW"))
        x = jnp.maximum(x + b.reshape(1, -1, 1, 1), 0.0)
    x = x.reshape(x.shape[0], -1)
    w, b = ref_params["head"]
    return jnp.maximum(x @ w.T + b, 0.0)


if __name__ == "__main__":
    # Spatial 36 is the smallest input surviving the three strided convs
    # (36 -> 8 -> 3 -> 1); smaller sizes (e.g. 16) are invalid for this stack.
    batch, in_ch, H, W = 2, 4, 36, 36
    feat_size = 32

    key = jax.random.PRNGKey(0)
    pkey, xkey = jax.random.split(key)
    params = init_cnn_params(pkey, (in_ch, H, W), feat_size)
    obs = jax.random.normal(xkey, (batch, in_ch, H, W), dtype=jnp.float32)

    fwd = jax.jit(functools.partial(cnn_forward, params))
    out = jax.block_until_ready(fwd(obs))

    assert out.shape == (batch, feat_size), out.shape
    assert bool(jnp.all(out >= 0.0))                      # final ReLU
    ref = _reference_forward(params["ref"], obs)          # same bf16 weights
    assert float(jnp.max(jnp.abs(out - ref))) < 0.2, "mismatch vs XLA reference"
    print("KERNEL_OK")
</pallas_src>

<mosaic_0001>
module attributes {stable_mosaic.version = 11 : i64} {
  func.func @_cnn_fused_kernel(%arg0: memref<384x256xbf16, #tpu.memory_space<vmem>>, %arg1: memref<256x32xbf16, #tpu.memory_space<vmem>>, %arg2: memref<1x32xf32, #tpu.memory_space<vmem>>, %arg3: memref<16x32x64xbf16, #tpu.memory_space<vmem>>, %arg4: memref<1x64xf32, #tpu.memory_space<vmem>>, %arg5: memref<9x64x64xbf16, #tpu.memory_space<vmem>>, %arg6: memref<1x64xf32, #tpu.memory_space<vmem>>, %arg7: memref<64x32xbf16, #tpu.memory_space<vmem>>, %arg8: memref<1x32xf32, #tpu.memory_space<vmem>>, %arg9: memref<2x32xf32, #tpu.memory_space<vmem>>) attributes {dimension_semantics = [], scalar_prefetch = 0 : i64, scratch_operands = 0 : i64, tpu.core_type = #tpu.core_type<tc>} {
    %c0 = arith.constant 0 : index
    %c0_0 = arith.constant 0 : index
    %0 = vector.load %arg0[%c0, %c0_0] : memref<384x256xbf16, #tpu.memory_space<vmem>>, vector<384x256xbf16>
    %c0_1 = arith.constant 0 : index
    %c0_2 = arith.constant 0 : index
    %1 = vector.load %arg1[%c0_1, %c0_2] : memref<256x32xbf16, #tpu.memory_space<vmem>>, vector<256x32xbf16>
    %cst = arith.constant dense<0.000000e+00> : vector<384x32xf32>
    %2 = tpu.matmul %0, %1, %cst {dimension_numbers = #tpu.dot_dimension_numbers<[1], [0], [0], [1], [0, 0, 1, 1], [], []>} : vector<384x256xbf16>, vector<256x32xbf16>, vector<384x32xf32> -> vector<384x32xf32>
    %c0_3 = arith.constant 0 : index
    %c0_4 = arith.constant 0 : index
    %3 = vector.load %arg2[%c0_3, %c0_4] : memref<1x32xf32, #tpu.memory_space<vmem>>, vector<1x32xf32>
    %4 = vector.broadcast %3 : vector<1x32xf32> to vector<384x32xf32>
    %5 = arith.addf %2, %4 : vector<384x32xf32>
    %cst_5 = arith.constant 0.000000e+00 : f32
    %6 = vector.broadcast %cst_5 : f32 to vector<384x32xf32>
    %7 = arith.maximumf %5, %6 : vector<384x32xf32>
    %cst_6 = arith.constant 0.000000e+00 : f32
    %8 = vector.broadcast %cst_6 : f32 to vector<24x64xf32>
    %9 = vector.extract_strided_slice %7 {offsets = [0, 0], sizes = [24, 32], strides = [1, 1]} : vector<384x32xf32> to vector<24x32xf32>
    %10 = arith.truncf %9 : vector<24x32xf32> to vector<24x32xbf16>
    %c0_7 = arith.constant 0 : index
    %c0_8 = arith.constant 0 : index
    %c0_9 = arith.constant 0 : index
    %11 = vector.load %arg3[%c0_7, %c0_8, %c0_9] : memref<16x32x64xbf16, #tpu.memory_space<vmem>>, vector<1x32x64xbf16>
    %12 = vector.shape_cast %11 : vector<1x32x64xbf16> to vector<32x64xbf16>
    %cst_10 = arith.constant dense<0.000000e+00> : vector<24x64xf32>
    %13 = tpu.matmul %10, %12, %cst_10 {dimension_numbers = #tpu.dot_dimension_numbers<[1], [0], [0], [1], [0, 0, 1, 1], [], []>} : vector<24x32xbf16>, vector<32x64xbf16>, vector<24x64xf32> -> vector<24x64xf32>
    %14 = arith.addf %8, %13 : vector<24x64xf32>
    %15 = vector.extract_strided_slice %7 {offsets = [24, 0], sizes = [24, 32], strides = [1, 1]} : vector<384x32xf32> to vector<24x32xf32>
    %16 = arith.truncf %15 : vector<24x32xf32> to vector<24x32xbf16>
    %c1 = arith.constant 1 : index
    %c0_11 = arith.constant 0 : index
    %c0_12 = arith.constant 0 : index
    %17 = vector.load %arg3[%c1, %c0_11, %c0_12] : memref<16x32x64xbf16, #tpu.memory_space<vmem>>, vector<1x32x64xbf16>
    %18 = vector.shape_cast %17 : vector<1x32x64xbf16> to vector<32x64xbf16>
    %cst_13 = arith.constant dense<0.000000e+00> : vector<24x64xf32>
    %19 = tpu.matmul %16, %18, %cst_13 {dimension_numbers = #tpu.dot_dimension_numbers<[1], [0], [0], [1], [0, 0, 1, 1], [], []>} : vector<24x32xbf16>, vector<32x64xbf16>, vector<24x64xf32> -> vector<24x64xf32>
    %20 = arith.addf %14, %19 : vector<24x64xf32>
    %21 = vector.extract_strided_slice %7 {offsets = [48, 0], sizes = [24, 32], strides = [1, 1]} : vector<384x32xf32> to vector<24x32xf32>
    %22 = arith.truncf %21 : vector<24x32xf32> to vector<24x32xbf16>
    %c2 = arith.constant 2 : index
    %c0_14 = arith.constant 0 : index
    %c0_15 = arith.constant 0 : index
    %23 = vector.load %arg3[%c2, %c0_14, %c0_15] : memref<16x32x64xbf16, #tpu.memory_space<vmem>>, vector<1x32x64xbf16>
    %24 = vector.shape_cast %23 : vector<1x32x64xbf16> to vector<32x64xbf16>
    %cst_16 = arith.constant dense<0.000000e+00> : vector<24x64xf32>
    %25 = tpu.matmul %22, %24, %cst_16 {dimension_numbers = #tpu.dot_dimension_numbers<[1], [0], [0], [1], [0, 0, 1, 1], [], []>} : vector<24x32xbf16>, vector<32x64xbf16>, vector<24x64xf32> -> vector<24x64xf32>
    %26 = arith.addf %20, %25 : vector<24x64xf32>
    %27 = vector.extract_strided_slice %7 {offsets = [72, 0], sizes = [24, 32], strides = [1, 1]} : vector<384x32xf32> to vector<24x32xf32>
    %28 = arith.truncf %27 : vector<24x32xf32> to vector<24x32xbf16>
    %c3 = arith.constant 3 : index
    %c0_17 = arith.constant 0 : index
    %c0_18 = arith.constant 0 : index
    %29 = vector.load %arg3[%c3, %c0_17, %c0_18] : memref<16x32x64xbf16, #tpu.memory_space<vmem>>, vector<1x32x64xbf16>
    %30 = vector.shape_cast %29 : vector<1x32x64xbf16> to vector<32x64xbf16>
    %cst_19 = arith.constant dense<0.000000e+00> : vector<24x64xf32>
    %31 = tpu.matmul %28, %30, %cst_19 {dimension_numbers = #tpu.dot_dimension_numbers<[1], [0], [0], [1], [0, 0, 1, 1], [], []>} : vector<24x32xbf16>, vector<32x64xbf16>, vector<24x64xf32> -> vector<24x64xf32>
    %32 = arith.addf %26, %31 : vector<24x64xf32>
    %33 = vector.extract_strided_slice %7 {offsets = [96, 0], sizes = [24, 32], strides = [1, 1]} : vector<384x32xf32> to vector<24x32xf32>
    %34 = arith.truncf %33 : vector<24x32xf32> to vector<24x32xbf16>
    %c4 = arith.constant 4 : index
    %c0_20 = arith.constant 0 : index
    %c0_21 = arith.constant 0 : index
    %35 = vector.load %arg3[%c4, %c0_20, %c0_21] : memref<16x32x64xbf16, #tpu.memory_space<vmem>>, vector<1x32x64xbf16>
    %36 = vector.shape_cast %35 : vector<1x32x64xbf16> to vector<32x64xbf16>
    %cst_22 = arith.constant dense<0.000000e+00> : vector<24x64xf32>
    %37 = tpu.matmul %34, %36, %cst_22 {dimension_numbers = #tpu.dot_dimension_numbers<[1], [0], [0], [1], [0, 0, 1, 1], [], []>} : vector<24x32xbf16>, vector<32x64xbf16>, vector<24x64xf32> -> vector<24x64xf32>
    %38 = arith.addf %32, %37 : vector<24x64xf32>
    %39 = vector.extract_strided_slice %7 {offsets = [120, 0], sizes = [24, 32], strides = [1, 1]} : vector<384x32xf32> to vector<24x32xf32>
    %40 = arith.truncf %39 : vector<24x32xf32> to vector<24x32xbf16>
    %c5 = arith.constant 5 : index
    %c0_23 = arith.constant 0 : index
    %c0_24 = arith.constant 0 : index
    %41 = vector.load %arg3[%c5, %c0_23, %c0_24] : memref<16x32x64xbf16, #tpu.memory_space<vmem>>, vector<1x32x64xbf16>
    %42 = vector.shape_cast %41 : vector<1x32x64xbf16> to vector<32x64xbf16>
    %cst_25 = arith.constant dense<0.000000e+00> : vector<24x64xf32>
    %43 = tpu.matmul %40, %42, %cst_25 {dimension_numbers = #tpu.dot_dimension_numbers<[1], [0], [0], [1], [0, 0, 1, 1], [], []>} : vector<24x32xbf16>, vector<32x64xbf16>, vector<24x64xf32> -> vector<24x64xf32>
    %44 = arith.addf %38, %43 : vector<24x64xf32>
    %45 = vector.extract_strided_slice %7 {offsets = [144, 0], sizes = [24, 32], strides = [1, 1]} : vector<384x32xf32> to vector<24x32xf32>
    %46 = arith.truncf %45 : vector<24x32xf32> to vector<24x32xbf16>
    %c6 = arith.constant 6 : index
    %c0_26 = arith.constant 0 : index
    %c0_27 = arith.constant 0 : index
    %47 = vector.load %arg3[%c6, %c0_26, %c0_27] : memref<16x32x64xbf16, #tpu.memory_space<vmem>>, vector<1x32x64xbf16>
    %48 = vector.shape_cast %47 : vector<1x32x64xbf16> to vector<32x64xbf16>
    %cst_28 = arith.constant dense<0.000000e+00> : vector<24x64xf32>
    %49 = tpu.matmul %46, %48, %cst_28 {dimension_numbers = #tpu.dot_dimension_numbers<[1], [0], [0], [1], [0, 0, 1, 1], [], []>} : vector<24x32xbf16>, vector<32x64xbf16>, vector<24x64xf32> -> vector<24x64xf32>
    %50 = arith.addf %44, %49 : vector<24x64xf32>
    %51 = vector.extract_strided_slice %7 {offsets = [168, 0], sizes = [24, 32], strides = [1, 1]} : vector<384x32xf32> to vector<24x32xf32>
    %52 = arith.truncf %51 : vector<24x32xf32> to vector<24x32xbf16>
    %c7 = arith.constant 7 : index
    %c0_29 = arith.constant 0 : index
    %c0_30 = arith.constant 0 : index
    %53 = vector.load %arg3[%c7, %c0_29, %c0_30] : memref<16x32x64xbf16, #tpu.memory_space<vmem>>, vector<1x32x64xbf16>
    %54 = vector.shape_cast %53 : vector<1x32x64xbf16> to vector<32x64xbf16>
    %cst_31 = arith.constant dense<0.000000e+00> : vector<24x64xf32>
    %55 = tpu.matmul %52, %54, %cst_31 {dimension_numbers = #tpu.dot_dimension_numbers<[1], [0], [0], [1], [0, 0, 1, 1], [], []>} : vector<24x32xbf16>, vector<32x64xbf16>, vector<24x64xf32> -> vector<24x64xf32>
    %56 = arith.addf %50, %55 : vector<24x64xf32>
    %57 = vector.extract_strided_slice %7 {offsets = [192, 0], sizes = [24, 32], strides = [1, 1]} : vector<384x32xf32> to vector<24x32xf32>
    %58 = arith.truncf %57 : vector<24x32xf32> to vector<24x32xbf16>
    %c8 = arith.constant 8 : index
    %c0_32 = arith.constant 0 : index
    %c0_33 = arith.constant 0 : index
    %59 = vector.load %arg3[%c8, %c0_32, %c0_33] : memref<16x32x64xbf16, #tpu.memory_space<vmem>>, vector<1x32x64xbf16>
    %60 = vector.shape_cast %59 : vector<1x32x64xbf16> to vector<32x64xbf16>
    %cst_34 = arith.constant dense<0.000000e+00> : vector<24x64xf32>
    %61 = tpu.matmul %58, %60, %cst_34 {dimension_numbers = #tpu.dot_dimension_numbers<[1], [0], [0], [1], [0, 0, 1, 1], [], []>} : vector<24x32xbf16>, vector<32x64xbf16>, vector<24x64xf32> -> vector<24x64xf32>
    %62 = arith.addf %56, %61 : vector<24x64xf32>
    %63 = vector.extract_strided_slice %7 {offsets = [216, 0], sizes = [24, 32], strides = [1, 1]} : vector<384x32xf32> to vector<24x32xf32>
    %64 = arith.truncf %63 : vector<24x32xf32> to vector<24x32xbf16>
    %c9 = arith.constant 9 : index
    %c0_35 = arith.constant 0 : index
    %c0_36 = arith.constant 0 : index
    %65 = vector.load %arg3[%c9, %c0_35, %c0_36] : memref<16x32x64xbf16, #tpu.memory_space<vmem>>, vector<1x32x64xbf16>
    %66 = vector.shape_cast %65 : vector<1x32x64xbf16> to vector<32x64xbf16>
    %cst_37 = arith.constant dense<0.000000e+00> : vector<24x64xf32>
    %67 = tpu.matmul %64, %66, %cst_37 {dimension_numbers = #tpu.dot_dimension_numbers<[1], [0], [0], [1], [0, 0, 1, 1], [], []>} : vector<24x32xbf16>, vector<32x64xbf16>, vector<24x64xf32> -> vector<24x64xf32>
    %68 = arith.addf %62, %67 : vector<24x64xf32>
    %69 = vector.extract_strided_slice %7 {offsets = [240, 0], sizes = [24, 32], strides = [1, 1]} : vector<384x32xf32> to vector<24x32xf32>
    %70 = arith.truncf %69 : vector<24x32xf32> to vector<24x32xbf16>
    %c10 = arith.constant 10 : index
    %c0_38 = arith.constant 0 : index
    %c0_39 = arith.constant 0 : index
    %71 = vector.load %arg3[%c10, %c0_38, %c0_39] : memref<16x32x64xbf16, #tpu.memory_space<vmem>>, vector<1x32x64xbf16>
    %72 = vector.shape_cast %71 : vector<1x32x64xbf16> to vector<32x64xbf16>
    %cst_40 = arith.constant dense<0.000000e+00> : vector<24x64xf32>
    %73 = tpu.matmul %70, %72, %cst_40 {dimension_numbers = #tpu.dot_dimension_numbers<[1], [0], [0], [1], [0, 0, 1, 1], [], []>} : vector<24x32xbf16>, vector<32x64xbf16>, vector<24x64xf32> -> vector<24x64xf32>
    %74 = arith.addf %68, %73 : vector<24x64xf32>
    %75 = vector.extract_strided_slice %7 {offsets = [264, 0], sizes = [24, 32], strides = [1, 1]} : vector<384x32xf32> to vector<24x32xf32>
    %76 = arith.truncf %75 : vector<24x32xf32> to vector<24x32xbf16>
    %c11 = arith.constant 11 : index
    %c0_41 = arith.constant 0 : index
    %c0_42 = arith.constant 0 : index
    %77 = vector.load %arg3[%c11, %c0_41, %c0_42] : memref<16x32x64xbf16, #tpu.memory_space<vmem>>, vector<1x32x64xbf16>
    %78 = vector.shape_cast %77 : vector<1x32x64xbf16> to vector<32x64xbf16>
    %cst_43 = arith.constant dense<0.000000e+00> : vector<24x64xf32>
    %79 = tpu.matmul %76, %78, %cst_43 {dimension_numbers = #tpu.dot_dimension_numbers<[1], [0], [0], [1], [0, 0, 1, 1], [], []>} : vector<24x32xbf16>, vector<32x64xbf16>, vector<24x64xf32> -> vector<24x64xf32>
    %80 = arith.addf %74, %79 : vector<24x64xf32>
    %81 = vector.extract_strided_slice %7 {offsets = [288, 0], sizes = [24, 32], strides = [1, 1]} : vector<384x32xf32> to vector<24x32xf32>
    %82 = arith.truncf %81 : vector<24x32xf32> to vector<24x32xbf16>
    %c12 = arith.constant 12 : index
    %c0_44 = arith.constant 0 : index
    %c0_45 = arith.constant 0 : index
    %83 = vector.load %arg3[%c12, %c0_44, %c0_45] : memref<16x32x64xbf16, #tpu.memory_space<vmem>>, vector<1x32x64xbf16>
    %84 = vector.shape_cast %83 : vector<1x32x64xbf16> to vector<32x64xbf16>
    %cst_46 = arith.constant dense<0.000000e+00> : vector<24x64xf32>
    %85 = tpu.matmul %82, %84, %cst_46 {dimension_numbers = #tpu.dot_dimension_numbers<[1], [0], [0], [1], [0, 0, 1, 1], [], []>} : vector<24x32xbf16>, vector<32x64xbf16>, vector<24x64xf32> -> vector<24x64xf32>
    %86 = arith.addf %80, %85 : vector<24x64xf32>
    %87 = vector.extract_strided_slice %7 {offsets = [312, 0], sizes = [24, 32], strides = [1, 1]} : vector<384x32xf32> to vector<24x32xf32>
    %88 = arith.truncf %87 : vector<24x32xf32> to vector<24x32xbf16>
    %c13 = arith.constant 13 : index
    %c0_47 = arith.constant 0 : index
    %c0_48 = arith.constant 0 : index
    %89 = vector.load %arg3[%c13, %c0_47, %c0_48] : memref<16x32x64xbf16, #tpu.memory_space<vmem>>, vector<1x32x64xbf16>
    %90 = vector.shape_cast %89 : vector<1x32x64xbf16> to vector<32x64xbf16>
    %cst_49 = arith.constant dense<0.000000e+00> : vector<24x64xf32>
    %91 = tpu.matmul %88, %90, %cst_49 {dimension_numbers = #tpu.dot_dimension_numbers<[1], [0], [0], [1], [0, 0, 1, 1], [], []>} : vector<24x32xbf16>, vector<32x64xbf16>, vector<24x64xf32> -> vector<24x64xf32>
    %92 = arith.addf %86, %91 : vector<24x64xf32>
    %93 = vector.extract_strided_slice %7 {offsets = [336, 0], sizes = [24, 32], strides = [1, 1]} : vector<384x32xf32> to vector<24x32xf32>
    %94 = arith.truncf %93 : vector<24x32xf32> to vector<24x32xbf16>
    %c14 = arith.constant 14 : index
    %c0_50 = arith.constant 0 : index
    %c0_51 = arith.constant 0 : index
    %95 = vector.load %arg3[%c14, %c0_50, %c0_51] : memref<16x32x64xbf16, #tpu.memory_space<vmem>>, vector<1x32x64xbf16>
    %96 = vector.shape_cast %95 : vector<1x32x64xbf16> to vector<32x64xbf16>
    %cst_52 = arith.constant dense<0.000000e+00> : vector<24x64xf32>
    %97 = tpu.matmul %94, %96, %cst_52 {dimension_numbers = #tpu.dot_dimension_numbers<[1], [0], [0], [1], [0, 0, 1, 1], [], []>} : vector<24x32xbf16>, vector<32x64xbf16>, vector<24x64xf32> -> vector<24x64xf32>
    %98 = arith.addf %92, %97 : vector<24x64xf32>
    %99 = vector.extract_strided_slice %7 {offsets = [360, 0], sizes = [24, 32], strides = [1, 1]} : vector<384x32xf32> to vector<24x32xf32>
    %100 = arith.truncf %99 : vector<24x32xf32> to vector<24x32xbf16>
    %c15 = arith.constant 15 : index
    %c0_53 = arith.constant 0 : index
    %c0_54 = arith.constant 0 : index
    %101 = vector.load %arg3[%c15, %c0_53, %c0_54] : memref<16x32x64xbf16, #tpu.memory_space<vmem>>, vector<1x32x64xbf16>
    %102 = vector.shape_cast %101 : vector<1x32x64xbf16> to vector<32x64xbf16>
    %cst_55 = arith.constant dense<0.000000e+00> : vector<24x64xf32>
    %103 = tpu.matmul %100, %102, %cst_55 {dimension_numbers = #tpu.dot_dimension_numbers<[1], [0], [0], [1], [0, 0, 1, 1], [], []>} : vector<24x32xbf16>, vector<32x64xbf16>, vector<24x64xf32> -> vector<24x64xf32>
    %104 = arith.addf %98, %103 : vector<24x64xf32>
    %c0_56 = arith.constant 0 : index
    %c0_57 = arith.constant 0 : index
    %105 = vector.load %arg4[%c0_56, %c0_57] : memref<1x64xf32, #tpu.memory_space<vmem>>, vector<1x64xf32>
    %106 = vector.broadcast %105 : vector<1x64xf32> to vector<24x64xf32>
    %107 = arith.addf %104, %106 : vector<24x64xf32>
    %cst_58 = arith.constant 0.000000e+00 : f32
    %108 = vector.broadcast %cst_58 : f32 to vector<24x64xf32>
    %109 = arith.maximumf %107, %108 : vector<24x64xf32>
    %cst_59 = arith.constant 0.000000e+00 : f32
    %110 = vector.broadcast %cst_59 : f32 to vector<2x64xf32>
    %111 = vector.extract_strided_slice %109 {offsets = [0, 0], sizes = [2, 64], strides = [1, 1]} : vector<24x64xf32> to vector<2x64xf32>
    %112 = arith.truncf %111 : vector<2x64xf32> to vector<2x64xbf16>
    %c0_60 = arith.constant 0 : index
    %c0_61 = arith.constant 0 : index
    %c0_62 = arith.constant 0 : index
    %113 = vector.load %arg5[%c0_60, %c0_61, %c0_62] : memref<9x64x64xbf16, #tpu.memory_space<vmem>>, vector<1x64x64xbf16>
    %114 = vector.shape_cast %113 : vector<1x64x64xbf16> to vector<64x64xbf16>
    %cst_63 = arith.constant dense<0.000000e+00> : vector<2x64xf32>
    %115 = tpu.matmul %112, %114, %cst_63 {dimension_numbers = #tpu.dot_dimension_numbers<[1], [0], [0], [1], [0, 0, 1, 1], [], []>} : vector<2x64xbf16>, vector<64x64xbf16>, vector<2x64xf32> -> vector<2x64xf32>
    %116 = arith.addf %110, %115 : vector<2x64xf32>
    %117 = vector.extract_strided_slice %109 {offsets = [2, 0], sizes = [2, 64], strides = [1, 1]} : vector<24x64xf32> to vector<2x64xf32>
    %118 = arith.truncf %117 : vector<2x64xf32> to vector<2x64xbf16>
    %c1_64 = arith.constant 1 : index
    %c0_65 = arith.constant 0 : index
    %c0_66 = arith.constant 0 : index
    %119 = vector.load %arg5[%c1_64, %c0_65, %c0_66] : memref<9x64x64xbf16, #tpu.memory_space<vmem>>, vector<1x64x64xbf16>
    %120 = vector.shape_cast %119 : vector<1x64x64xbf16> to vector<64x64xbf16>
    %cst_67 = arith.constant dense<0.000000e+00> : vector<2x64xf32>
    %121 = tpu.matmul %118, %120, %cst_67 {dimension_numbers = #tpu.dot_dimension_numbers<[1], [0], [0], [1], [0, 0, 1, 1], [], []>} : vector<2x64xbf16>, vector<64x64xbf16>, vector<2x64xf32> -> vector<2x64xf32>
    %122 = arith.addf %116, %121 : vector<2x64xf32>
    %123 = vector.extract_strided_slice %109 {offsets = [4, 0], sizes = [2, 64], strides = [1, 1]} : vector<24x64xf32> to vector<2x64xf32>
    %124 = arith.truncf %123 : vector<2x64xf32> to vector<2x64xbf16>
    %c2_68 = arith.constant 2 : index
    %c0_69 = arith.constant 0 : index
    %c0_70 = arith.constant 0 : index
    %125 = vector.load %arg5[%c2_68, %c0_69, %c0_70] : memref<9x64x64xbf16, #tpu.memory_space<vmem>>, vector<1x64x64xbf16>
    %126 = vector.shape_cast %125 : vector<1x64x64xbf16> to vector<64x64xbf16>
    %cst_71 = arith.constant dense<0.000000e+00> : vector<2x64xf32>
    %127 = tpu.matmul %124, %126, %cst_71 {dimension_numbers = #tpu.dot_dimension_numbers<[1], [0], [0], [1], [0, 0, 1, 1], [], []>} : vector<2x64xbf16>, vector<64x64xbf16>, vector<2x64xf32> -> vector<2x64xf32>
    %128 = arith.addf %122, %127 : vector<2x64xf32>
    %129 = vector.extract_strided_slice %109 {offsets = [6, 0], sizes = [2, 64], strides = [1, 1]} : vector<24x64xf32> to vector<2x64xf32>
    %130 = arith.truncf %129 : vector<2x64xf32> to vector<2x64xbf16>
    %c3_72 = arith.constant 3 : index
    %c0_73 = arith.constant 0 : index
    %c0_74 = arith.constant 0 : index
    %131 = vector.load %arg5[%c3_72, %c0_73, %c0_74] : memref<9x64x64xbf16, #tpu.memory_space<vmem>>, vector<1x64x64xbf16>
    %132 = vector.shape_cast %131 : vector<1x64x64xbf16> to vector<64x64xbf16>
    %cst_75 = arith.constant dense<0.000000e+00> : vector<2x64xf32>
    %133 = tpu.matmul %130, %132, %cst_75 {dimension_numbers = #tpu.dot_dimension_numbers<[1], [0], [0], [1], [0, 0, 1, 1], [], []>} : vector<2x64xbf16>, vector<64x64xbf16>, vector<2x64xf32> -> vector<2x64xf32>
    %134 = arith.addf %128, %133 : vector<2x64xf32>
    %135 = vector.extract_strided_slice %109 {offsets = [8, 0], sizes = [2, 64], strides = [1, 1]} : vector<24x64xf32> to vector<2x64xf32>
    %136 = arith.truncf %135 : vector<2x64xf32> to vector<2x64xbf16>
    %c4_76 = arith.constant 4 : index
    %c0_77 = arith.constant 0 : index
    %c0_78 = arith.constant 0 : index
    %137 = vector.load %arg5[%c4_76, %c0_77, %c0_78] : memref<9x64x64xbf16, #tpu.memory_space<vmem>>, vector<1x64x64xbf16>
    %138 = vector.shape_cast %137 : vector<1x64x64xbf16> to vector<64x64xbf16>
    %cst_79 = arith.constant dense<0.000000e+00> : vector<2x64xf32>
    %139 = tpu.matmul %136, %138, %cst_79 {dimension_numbers = #tpu.dot_dimension_numbers<[1], [0], [0], [1], [0, 0, 1, 1], [], []>} : vector<2x64xbf16>, vector<64x64xbf16>, vector<2x64xf32> -> vector<2x64xf32>
    %140 = arith.addf %134, %139 : vector<2x64xf32>
    %141 = vector.extract_strided_slice %109 {offsets = [10, 0], sizes = [2, 64], strides = [1, 1]} : vector<24x64xf32> to vector<2x64xf32>
    %142 = arith.truncf %141 : vector<2x64xf32> to vector<2x64xbf16>
    %c5_80 = arith.constant 5 : index
    %c0_81 = arith.constant 0 : index
    %c0_82 = arith.constant 0 : index
    %143 = vector.load %arg5[%c5_80, %c0_81, %c0_82] : memref<9x64x64xbf16, #tpu.memory_space<vmem>>, vector<1x64x64xbf16>
    %144 = vector.shape_cast %143 : vector<1x64x64xbf16> to vector<64x64xbf16>
    %cst_83 = arith.constant dense<0.000000e+00> : vector<2x64xf32>
    %145 = tpu.matmul %142, %144, %cst_83 {dimension_numbers = #tpu.dot_dimension_numbers<[1], [0], [0], [1], [0, 0, 1, 1], [], []>} : vector<2x64xbf16>, vector<64x64xbf16>, vector<2x64xf32> -> vector<2x64xf32>
    %146 = arith.addf %140, %145 : vector<2x64xf32>
    %147 = vector.extract_strided_slice %109 {offsets = [12, 0], sizes = [2, 64], strides = [1, 1]} : vector<24x64xf32> to vector<2x64xf32>
    %148 = arith.truncf %147 : vector<2x64xf32> to vector<2x64xbf16>
    %c6_84 = arith.constant 6 : index
    %c0_85 = arith.constant 0 : index
    %c0_86 = arith.constant 0 : index
    %149 = vector.load %arg5[%c6_84, %c0_85, %c0_86] : memref<9x64x64xbf16, #tpu.memory_space<vmem>>, vector<1x64x64xbf16>
    %150 = vector.shape_cast %149 : vector<1x64x64xbf16> to vector<64x64xbf16>
    %cst_87 = arith.constant dense<0.000000e+00> : vector<2x64xf32>
    %151 = tpu.matmul %148, %150, %cst_87 {dimension_numbers = #tpu.dot_dimension_numbers<[1], [0], [0], [1], [0, 0, 1, 1], [], []>} : vector<2x64xbf16>, vector<64x64xbf16>, vector<2x64xf32> -> vector<2x64xf32>
    %152 = arith.addf %146, %151 : vector<2x64xf32>
    %153 = vector.extract_strided_slice %109 {offsets = [14, 0], sizes = [2, 64], strides = [1, 1]} : vector<24x64xf32> to vector<2x64xf32>
    %154 = arith.truncf %153 : vector<2x64xf32> to vector<2x64xbf16>
    %c7_88 = arith.constant 7 : index
    %c0_89 = arith.constant 0 : index
    %c0_90 = arith.constant 0 : index
    %155 = vector.load %arg5[%c7_88, %c0_89, %c0_90] : memref<9x64x64xbf16, #tpu.memory_space<vmem>>, vector<1x64x64xbf16>
    %156 = vector.shape_cast %155 : vector<1x64x64xbf16> to vector<64x64xbf16>
    %cst_91 = arith.constant dense<0.000000e+00> : vector<2x64xf32>
    %157 = tpu.matmul %154, %156, %cst_91 {dimension_numbers = #tpu.dot_dimension_numbers<[1], [0], [0], [1], [0, 0, 1, 1], [], []>} : vector<2x64xbf16>, vector<64x64xbf16>, vector<2x64xf32> -> vector<2x64xf32>
    %158 = arith.addf %152, %157 : vector<2x64xf32>
    %159 = vector.extract_strided_slice %109 {offsets = [16, 0], sizes = [2, 64], strides = [1, 1]} : vector<24x64xf32> to vector<2x64xf32>
    %160 = arith.truncf %159 : vector<2x64xf32> to vector<2x64xbf16>
    %c8_92 = arith.constant 8 : index
    %c0_93 = arith.constant 0 : index
    %c0_94 = arith.constant 0 : index
    %161 = vector.load %arg5[%c8_92, %c0_93, %c0_94] : memref<9x64x64xbf16, #tpu.memory_space<vmem>>, vector<1x64x64xbf16>
    %162 = vector.shape_cast %161 : vector<1x64x64xbf16> to vector<64x64xbf16>
    %cst_95 = arith.constant dense<0.000000e+00> : vector<2x64xf32>
    %163 = tpu.matmul %160, %162, %cst_95 {dimension_numbers = #tpu.dot_dimension_numbers<[1], [0], [0], [1], [0, 0, 1, 1], [], []>} : vector<2x64xbf16>, vector<64x64xbf16>, vector<2x64xf32> -> vector<2x64xf32>
    %164 = arith.addf %158, %163 : vector<2x64xf32>
    %c0_96 = arith.constant 0 : index
    %c0_97 = arith.constant 0 : index
    %165 = vector.load %arg6[%c0_96, %c0_97] : memref<1x64xf32, #tpu.memory_space<vmem>>, vector<1x64xf32>
    %166 = vector.broadcast %165 : vector<1x64xf32> to vector<2x64xf32>
    %167 = arith.addf %164, %166 : vector<2x64xf32>
    %cst_98 = arith.constant 0.000000e+00 : f32
    %168 = vector.broadcast %cst_98 : f32 to vector<2x64xf32>
    %169 = arith.maximumf %167, %168 : vector<2x64xf32>
    %170 = arith.truncf %169 : vector<2x64xf32> to vector<2x64xbf16>
    %c0_99 = arith.constant 0 : index
    %c0_100 = arith.constant 0 : index
    %171 = vector.load %arg7[%c0_99, %c0_100] : memref<64x32xbf16, #tpu.memory_space<vmem>>, vector<64x32xbf16>
    %cst_101 = arith.constant dense<0.000000e+00> : vector<2x32xf32>
    %172 = tpu.matmul %170, %171, %cst_101 {dimension_numbers = #tpu.dot_dimension_numbers<[1], [0], [0], [1], [0, 0, 1, 1], [], []>} : vector<2x64xbf16>, vector<64x32xbf16>, vector<2x32xf32> -> vector<2x32xf32>
    %c0_102 = arith.constant 0 : index
    %c0_103 = arith.constant 0 : index
    %173 = vector.load %arg8[%c0_102, %c0_103] : memref<1x32xf32, #tpu.memory_space<vmem>>, vector<1x32xf32>
    %174 = vector.broadcast %173 : vector<1x32xf32> to vector<2x32xf32>
    %175 = arith.addf %172, %174 : vector<2x32xf32>
    %cst_104 = arith.constant 0.000000e+00 : f32
    %176 = vector.broadcast %cst_104 : f32 to vector<2x32xf32>
    %177 = arith.maximumf %175, %176 : vector<2x32xf32>
    %c0_105 = arith.constant 0 : index
    %c0_106 = arith.constant 0 : index
    %178 = vector.load %arg9[%c0_105, %c0_106] : memref<2x32xf32, #tpu.memory_space<vmem>>, vector<2x32xf32>
    tpu.vector_store %arg9[%c0_105, %c0_106], %177 {strides = array<i32>} : memref<2x32xf32, #tpu.memory_space<vmem>>, vector<2x32xf32>,
    return
  }
}

</mosaic_0001>

<llo_original>
// kernel: cnn_forward.1
$region0: #{cnn_forward.1}
  #allocation0 [shape = 'u32[]', space=smem, size = 0x4, offset = 0x4, fixed_abs, tag = 'smem constant byte address 0x4 - core index']
  #allocation1 [shape = 'u32[144,128]{1,0:T(1,128)}', space=vmem, size = 0x12000, scoped, tag = 'internal scratch']
  %s0 = inlined_call_operand.vmem [shape: bf16[384,256], index: 0, kind: input, shape index: {}]
  %s1 = inlined_call_operand.vmem [shape: bf16[256,32], index: 1, kind: input, shape index: {}]
  %s2 = inlined_call_operand.vmem [shape: f32[1,32], index: 2, kind: input, shape index: {}, may-alias: {2,8}]
  %s3 = inlined_call_operand.vmem [shape: bf16[16,32,64], index: 3, kind: input, shape index: {}]
  %s4 = inlined_call_operand.vmem [shape: f32[1,64], index: 4, kind: input, shape index: {}, may-alias: {4,6}]
  %s5 = inlined_call_operand.vmem [shape: bf16[9,64,64], index: 5, kind: input, shape index: {}]
  %s6 = inlined_call_operand.vmem [shape: f32[1,64], index: 6, kind: input, shape index: {}, may-alias: {4,6}]
  %s7 = inlined_call_operand.vmem [shape: bf16[64,32], index: 7, kind: input, shape index: {}]
  %s8 = inlined_call_operand.vmem [shape: f32[1,32], index: 8, kind: input, shape index: {}, may-alias: {2,8}]
  %s9 = inlined_call_operand.hbm [shape: f32[2,32], index: 9, kind: output, shape index: {}]
  %s10 = sld [smem:[#allocation0]]
  $region46: #{cnn_forward.1} parent=0
    _
  %s12 = ssub.s32 1, %s10
  %s13 = scalar_select 0, %s12, %s10
  $region1: #{cnn_forward.1} parent=0
    #allocation2 [shape = 'u8[1024]{0}', space=vmem, size = 0x400, scoped, tag = 'output window, operand 0, single buffered']
    #allocation3 [shape = 's32[1]{0}', space=sflag, size = 0x4, scoped, tag = 'scoped memory for cnn_forward.1']
    %14 = vsyncpa [#allocation3], 0
    // Predicated region
    $region2: #{cnn_forward.1} parent=1 // pred_check
      _
    $region3: #{cnn_forward.1} parent=1 // pred_check_branch
      %16 = sbr.rel (0) target = $region5
    $region4: #{cnn_forward.1} parent=1 // pred_region
      _
    $region5: #{cnn_forward.1} parent=1 // pred_fallthru
      _
    // Predicated region
    $region6: #{cnn_forward.1} parent=1 // pred_check
      _
    $region7: #{cnn_forward.1} parent=1 // pred_check_branch
      %18 = sbr.rel (0) target = $region9
    $region8: #{cnn_forward.1} parent=1 // pred_region
      _
    $region9: #{cnn_forward.1} parent=1 // pred_fallthru
      _
    // Predicated region
    $region10: #{cnn_forward.1} parent=1 // pred_check
      _
    $region11: #{cnn_forward.1} parent=1 // pred_check_branch
      %20 = sbr.rel (0) target = $region13
    $region12: #{cnn_forward.1} parent=1 // pred_region
      _
    $region13: #{cnn_forward.1} parent=1 // pred_fallthru
      _
    // Predicated region
    $region14: #{cnn_forward.1} parent=1 // pred_check
      _
    $region15: #{cnn_forward.1} parent=1 // pred_check_branch
      %22 = sbr.rel (0) target = $region17
    $region16: #{cnn_forward.1} parent=1 // pred_region
      _
    $region17: #{cnn_forward.1} parent=1 // pred_fallthru
      _
    // Predicated region
    $region18: #{cnn_forward.1} parent=1 // pred_check
      _
    $region19: #{cnn_forward.1} parent=1 // pred_check_branch
      %24 = sbr.rel (0) target = $region21
    $region20: #{cnn_forward.1} parent=1 // pred_region
      _
    $region21: #{cnn_forward.1} parent=1 // pred_fallthru
      _
    // Predicated region
    $region22: #{cnn_forward.1} parent=1 // pred_check
      _
    $region23: #{cnn_forward.1} parent=1 // pred_check_branch
      %26 = sbr.rel (0) target = $region25
    $region24: #{cnn_forward.1} parent=1 // pred_region
      _
    $region25: #{cnn_forward.1} parent=1 // pred_fallthru
      _
    // Predicated region
    $region26: #{cnn_forward.1} parent=1 // pred_check
      _
    $region27: #{cnn_forward.1} parent=1 // pred_check_branch
      %28 = sbr.rel (0) target = $region29
    $region28: #{cnn_forward.1} parent=1 // pred_region
      _
    $region29: #{cnn_forward.1} parent=1 // pred_fallthru
      _
    // Predicated region
    $region30: #{cnn_forward.1} parent=1 // pred_check
      _
    $region31: #{cnn_forward.1} parent=1 // pred_check_branch
      %30 = sbr.rel (0) target = $region33
    $region32: #{cnn_forward.1} parent=1 // pred_region
      _
    $region33: #{cnn_forward.1} parent=1 // pred_fallthru
      _
    // Predicated region
    $region34: #{cnn_forward.1} parent=1 // pred_check
      _
    $region35: #{cnn_forward.1} parent=1 // pred_check_branch
      %32 = sbr.rel (0) target = $region37
    $region36: #{cnn_forward.1} parent=1 // pred_region
      _
    $region37: #{cnn_forward.1} parent=1 // pred_fallthru
      _
    %v34 = vld [vmem:[%s0] sm:$0xff]
    %v35 = vld [vmem:[%s0 + $0x8] sm:$0xff]
    %v36 = vld [vmem:[%s0 + $0x10] sm:$0xff]
    %v37 = vld [vmem:[%s0 + $0x18] sm:$0xff]
    %v38 = vld [vmem:[%s0 + $0x20] sm:$0xff]
    %v39 = vld [vmem:[%s0 + $0x28] sm:$0xff]
    %v40 = vld [vmem:[%s0 + $0x30] sm:$0xff]
    %v41 = vld [vmem:[%s0 + $0x38] sm:$0xff]
    %v42 = vld [vmem:[%s0 + $0x40] sm:$0xff]
    %v43 = vld [vmem:[%s0 + $0x48] sm:$0xff]
    %v44 = vld [vmem:[%s0 + $0x50] sm:$0xff]
    %v45 = vld [vmem:[%s0 + $0x58] sm:$0xff]
    %v46 = vld [vmem:[%s0 + $0x60] sm:$0xff]
    %v47 = vld [vmem:[%s0 + $0x68] sm:$0xff]
    %v48 = vld [vmem:[%s0 + $0x70] sm:$0xff]
    %v49 = vld [vmem:[%s0 + $0x78] sm:$0xff]
    %v50 = vld [vmem:[%s0 + $0x80] sm:$0xff]
    %v51 = vld [vmem:[%s0 + $0x88] sm:$0xff]
    %v52 = vld [vmem:[%s0 + $0x90] sm:$0xff]
    %v53 = vld [vmem:[%s0 + $0x98] sm:$0xff]
    %v54 = vld [vmem:[%s0 + $0xa0] sm:$0xff]
    %v55 = vld [vmem:[%s0 + $0xa8] sm:$0xff]
    %v56 = vld [vmem:[%s0 + $0xb0] sm:$0xff]
    %v57 = vld [vmem:[%s0 + $0xb8] sm:$0xff]
    %v58 = vld [vmem:[%s0 + $0xc0] sm:$0xff]
    %v59 = vld [vmem:[%s0 + $0xc8] sm:$0xff]
    %v60 = vld [vmem:[%s0 + $0xd0] sm:$0xff]
    %v61 = vld [vmem:[%s0 + $0xd8] sm:$0xff]
    %v62 = vld [vmem:[%s0 + $0xe0] sm:$0xff]
    %v63 = vld [vmem:[%s0 + $0xe8] sm:$0xff]
    %v64 = vld [vmem:[%s0 + $0xf0] sm:$0xff]
    %v65 = vld [vmem:[%s0 + $0xf8] sm:$0xff]
    %v66 = vld [vmem:[%s0 + $0x100] sm:$0xff]
    %v67 = vld [vmem:[%s0 + $0x108] sm:$0xff]
    %v68 = vld [vmem:[%s0 + $0x110] sm:$0xff]
    %v69 = vld [vmem:[%s0 + $0x118] sm:$0xff]
    %v70 = vld [vmem:[%s0 + $0x120] sm:$0xff]
    %v71 = vld [vmem:[%s0 + $0x128] sm:$0xff]
    %v72 = vld [vmem:[%s0 + $0x130] sm:$0xff]
    %v73 = vld [vmem:[%s0 + $0x138] sm:$0xff]
    %v74 = vld [vmem:[%s0 + $0x140] sm:$0xff]
    %v75 = vld [vmem:[%s0 + $0x148] sm:$0xff]
    %v76 = vld [vmem:[%s0 + $0x150] sm:$0xff]
    %v77 = vld [vmem:[%s0 + $0x158] sm:$0xff]
    %v78 = vld [vmem:[%s0 + $0x160] sm:$0xff]
    %v79 = vld [vmem:[%s0 + $0x168] sm:$0xff]
    %v80 = vld [vmem:[%s0 + $0x170] sm:$0xff]
    %v81 = vld [vmem:[%s0 + $0x178] sm:$0xff]
    %v82 = vld [vmem:[%s1] sm:$0xf]
    %v83 = vld [vmem:[%s1 + $0x4] sm:$0xf]
    %v84 = vld [vmem:[%s1 + $0x8] sm:$0xf]
    %v85 = vld [vmem:[%s1 + $0xc] sm:$0xf]
    %v86 = vld [vmem:[%s1 + $0x10] sm:$0xf]
    %v87 = vld [vmem:[%s1 + $0x14] sm:$0xf]
    %v88 = vld [vmem:[%s1 + $0x18] sm:$0xf]
    %v89 = vld [vmem:[%s1 + $0x1c] sm:$0xf]
    %v90 = vld [vmem:[%s1 + $0x20] sm:$0xf]
    %v91 = vld [vmem:[%s1 + $0x24] sm:$0xf]
    %v92 = vld [vmem:[%s1 + $0x28] sm:$0xf]
    %v93 = vld [vmem:[%s1 + $0x2c] sm:$0xf]
    %v94 = vld [vmem:[%s1 + $0x30] sm:$0xf]
    %v95 = vld [vmem:[%s1 + $0x34] sm:$0xf]
    %v96 = vld [vmem:[%s1 + $0x38] sm:$0xf]
    %v97 = vld [vmem:[%s1 + $0x3c] sm:$0xf]
    %v98 = vld [vmem:[%s1 + $0x40] sm:$0xf]
    %v99 = vld [vmem:[%s1 + $0x44] sm:$0xf]
    %v100 = vld [vmem:[%s1 + $0x48] sm:$0xf]
    %v101 = vld [vmem:[%s1 + $0x4c] sm:$0xf]
    %v102 = vld [vmem:[%s1 + $0x50] sm:$0xf]
    %v103 = vld [vmem:[%s1 + $0x54] sm:$0xf]
    %v104 = vld [vmem:[%s1 + $0x58] sm:$0xf]
    %v105 = vld [vmem:[%s1 + $0x5c] sm:$0xf]
    %v106 = vld [vmem:[%s1 + $0x60] sm:$0xf]
    %v107 = vld [vmem:[%s1 + $0x64] sm:$0xf]
    %v108 = vld [vmem:[%s1 + $0x68] sm:$0xf]
    %v109 = vld [vmem:[%s1 + $0x6c] sm:$0xf]
    %v110 = vld [vmem:[%s1 + $0x70] sm:$0xf]
    %v111 = vld [vmem:[%s1 + $0x74] sm:$0xf]
    %v112 = vld [vmem:[%s1 + $0x78] sm:$0xf]
    %v113 = vld [vmem:[%s1 + $0x7c] sm:$0xf]
    %v114 = vld [vmem:[%s2] sm:$0x1]
    %v116 = vlaneseq
    %v117 = vshrl.u32 %v116, 7
    %v118 = vsub.s32 0, %v117
    %v119 = vrot.slane %v114, %v118
    %v169 = vunpack.c.l.b16 %v34
    %v170 = vunpack.c.h.b16 %v34
    %v171 = vunpack.c.l.b16 %v35
    %v172 = vunpack.c.h.b16 %v35
    %v173 = vunpack.c.l.b16 %v36
    %v174 = vunpack.c.h.b16 %v36
    %v175 = vunpack.c.l.b16 %v37
    %v176 = vunpack.c.h.b16 %v37
    %v177 = vunpack.c.l.b16 %v38
    %v178 = vunpack.c.h.b16 %v38
    %v179 = vunpack.c.l.b16 %v39
    %v180 = vunpack.c.h.b16 %v39
    %v181 = vunpack.c.l.b16 %v40
    %v182 = vunpack.c.h.b16 %v40
    %v183 = vunpack.c.l.b16 %v41
    %v184 = vunpack.c.h.b16 %v41
    %v185 = vunpack.c.l.b16 %v42
    %v186 = vunpack.c.h.b16 %v42
    %v187 = vunpack.c.l.b16 %v43
    %v188 = vunpack.c.h.b16 %v43
    %v189 = vunpack.c.l.b16 %v44
    %v190 = vunpack.c.h.b16 %v44
    %v191 = vunpack.c.l.b16 %v45
    %v192 = vunpack.c.h.b16 %v45
    %v193 = vunpack.c.l.b16 %v46
    %v194 = vunpack.c.h.b16 %v46
    %v195 = vunpack.c.l.b16 %v47
    %v196 = vunpack.c.h.b16 %v47
    %v197 = vunpack.c.l.b16 %v48
    %v198 = vunpack.c.h.b16 %v48
    %v199 = vunpack.c.l.b16 %v49
    %v200 = vunpack.c.h.b16 %v49
    %v201 = vunpack.c.l.b16 %v50
    %v202 = vunpack.c.h.b16 %v50
    %v203 = vunpack.c.l.b16 %v51
    %v204 = vunpack.c.h.b16 %v51
    %v205 = vunpack.c.l.b16 %v52
    %v206 = vunpack.c.h.b16 %v52
    %v207 = vunpack.c.l.b16 %v53
    %v208 = vunpack.c.h.b16 %v53
    %v209 = vunpack.c.l.b16 %v54
    %v210 = vunpack.c.h.b16 %v54
    %v211 = vunpack.c.l.b16 %v55
    %v212 = vunpack.c.h.b16 %v55
    %v213 = vunpack.c.l.b16 %v56
    %v214 = vunpack.c.h.b16 %v56
    %v215 = vunpack.c.l.b16 %v57
    %v216 = vunpack.c.h.b16 %v57
    %v217 = vunpack.c.l.b16 %v58
    %v218 = vunpack.c.h.b16 %v58
    %v219 = vunpack.c.l.b16 %v59
    %v220 = vunpack.c.h.b16 %v59
    %v221 = vunpack.c.l.b16 %v60
    %v222 = vunpack.c.h.b16 %v60
    %v223 = vunpack.c.l.b16 %v61
    %v224 = vunpack.c.h.b16 %v61
    %v225 = vunpack.c.l.b16 %v62
    %v226 = vunpack.c.h.b16 %v62
    %v227 = vunpack.c.l.b16 %v63
    %v228 = vunpack.c.h.b16 %v63
    %v229 = vunpack.c.l.b16 %v64
    %v230 = vunpack.c.h.b16 %v64
    %v231 = vunpack.c.l.b16 %v65
    %v232 = vunpack.c.h.b16 %v65
    %v233 = vunpack.c.l.b16 %v66
    %v234 = vunpack.c.h.b16 %v66
    %v235 = vunpack.c.l.b16 %v67
    %v236 = vunpack.c.h.b16 %v67
    %v237 = vunpack.c.l.b16 %v68
    %v238 = vunpack.c.h.b16 %v68
    %v239 = vunpack.c.l.b16 %v69
    %v240 = vunpack.c.h.b16 %v69
    %v241 = vunpack.c.l.b16 %v70
    %v242 = vunpack.c.h.b16 %v70
    %v243 = vunpack.c.l.b16 %v71
    %v244 = vunpack.c.h.b16 %v71
    %v245 = vunpack.c.l.b16 %v72
    %v246 = vunpack.c.h.b16 %v72
    %v247 = vunpack.c.l.b16 %v73
    %v248 = vunpack.c.h.b16 %v73
    %v249 = vunpack.c.l.b16 %v74
    %v250 = vunpack.c.h.b16 %v74
    %v251 = vunpack.c.l.b16 %v75
    %v252 = vunpack.c.h.b16 %v75
    %v253 = vunpack.c.l.b16 %v76
    %v254 = vunpack.c.h.b16 %v76
    %v255 = vunpack.c.l.b16 %v77
    %v256 = vunpack.c.h.b16 %v77
    %v257 = vunpack.c.l.b16 %v78
    %v258 = vunpack.c.h.b16 %v78
    %v259 = vunpack.c.l.b16 %v79
    %v260 = vunpack.c.h.b16 %v79
    %v261 = vunpack.c.l.b16 %v80
    %v262 = vunpack.c.h.b16 %v80
    %v263 = vunpack.c.l.b16 %v81
    %v264 = vunpack.c.h.b16 %v81
    %v265 = vpack.c.b16 %v171, %v169
    %v266 = vpack.c.b16 %v172, %v170
    %v267 = vpack.c.b16 %v175, %v173
    %v268 = vpack.c.b16 %v176, %v174
    %v269 = vpack.c.b16 %v179, %v177
    %v270 = vpack.c.b16 %v180, %v178
    %v271 = vpack.c.b16 %v183, %v181
    %v272 = vpack.c.b16 %v184, %v182
    %v273 = vpack.c.b16 %v187, %v185
    %v274 = vpack.c.b16 %v188, %v186
    %v275 = vpack.c.b16 %v191, %v189
    %v276 = vpack.c.b16 %v192, %v190
    %v277 = vpack.c.b16 %v195, %v193
    %v278 = vpack.c.b16 %v196, %v194
    %v279 = vpack.c.b16 %v199, %v197
    %v280 = vpack.c.b16 %v200, %v198
    %v281 = vpack.c.b16 %v203, %v201
    %v282 = vpack.c.b16 %v204, %v202
    %v283 = vpack.c.b16 %v207, %v205
    %v284 = vpack.c.b16 %v208, %v206
    %v285 = vpack.c.b16 %v211, %v209
    %v286 = vpack.c.b16 %v212, %v210
    %v287 = vpack.c.b16 %v215, %v213
    %v288 = vpack.c.b16 %v216, %v214
    %v289 = vpack.c.b16 %v219, %v217
    %v290 = vpack.c.b16 %v220, %v218
    %v291 = vpack.c.b16 %v223, %v221
    %v292 = vpack.c.b16 %v224, %v222
    %v293 = vpack.c.b16 %v227, %v225
    %v294 = vpack.c.b16 %v228, %v226
    %v295 = vpack.c.b16 %v231, %v229
    %v296 = vpack.c.b16 %v232, %v230
    %v297 = vpack.c.b16 %v235, %v233
    %v298 = vpack.c.b16 %v236, %v234
    %v299 = vpack.c.b16 %v239, %v237
    %v300 = vpack.c.b16 %v240, %v238
    %v301 = vpack.c.b16 %v243, %v241
    %v302 = vpack.c.b16 %v244, %v242
    %v303 = vpack.c.b16 %v247, %v245
    %v304 = vpack.c.b16 %v248, %v246
    %v305 = vpack.c.b16 %v251, %v249
    %v306 = vpack.c.b16 %v252, %v250
    %v307 = vpack.c.b16 %v255, %v253
    %v308 = vpack.c.b16 %v256, %v254
    %v309 = vpack.c.b16 %v259, %v257
    %v310 = vpack.c.b16 %v260, %v258
    %v311 = vpack.c.b16 %v263, %v261
    %v312 = vpack.c.b16 %v264, %v262
    %v393 = vunpack.c.l.b16 %v82
    %v394 = vunpack.c.l.b16 %v83
    %v395 = vunpack.c.l.b16 %v84
    %v396 = vunpack.c.l.b16 %v85
    %v397 = vunpack.c.l.b16 %v86
    %v398 = vunpack.c.l.b16 %v87
    %v399 = vunpack.c.l.b16 %v88
    %v400 = vunpack.c.l.b16 %v89
    %v401 = vunpack.c.l.b16 %v90
    %v402 = vunpack.c.l.b16 %v91
    %v403 = vunpack.c.l.b16 %v92
    %v404 = vunpack.c.l.b16 %v93
    %v405 = vunpack.c.l.b16 %v94
    %v406 = vunpack.c.l.b16 %v95
    %v407 = vunpack.c.l.b16 %v96
    %v408 = vunpack.c.l.b16 %v97
    %v409 = vunpack.c.l.b16 %v98
    %v410 = vunpack.c.l.b16 %v99
    %v411 = vunpack.c.l.b16 %v100
    %v412 = vunpack.c.l.b16 %v101
    %v413 = vunpack.c.l.b16 %v102
    %v414 = vunpack.c.l.b16 %v103
    %v415 = vunpack.c.l.b16 %v104
    %v416 = vunpack.c.l.b16 %v105
    %v417 = vunpack.c.l.b16 %v106
    %v418 = vunpack.c.l.b16 %v107
    %v419 = vunpack.c.l.b16 %v108
    %v420 = vunpack.c.l.b16 %v109
    %v421 = vunpack.c.l.b16 %v110
    %v422 = vunpack.c.l.b16 %v111
    %v423 = vunpack.c.l.b16 %v112
    %v424 = vunpack.c.l.b16 %v113
    %v425 = vpack.c.b16 %v394, %v393
    %v426 = vpack.c.b16 %v396, %v395
    %v427 = vpack.c.b16 %v398, %v397
    %v428 = vpack.c.b16 %v400, %v399
    %v429 = vpack.c.b16 %v402, %v401
    %v430 = vpack.c.b16 %v404, %v403
    %v431 = vpack.c.b16 %v406, %v405
    %v432 = vpack.c.b16 %v408, %v407
    %v433 = vpack.c.b16 %v410, %v409
    %v434 = vpack.c.b16 %v412, %v411
    %v435 = vpack.c.b16 %v414, %v413
    %v436 = vpack.c.b16 %v416, %v415
    %v437 = vpack.c.b16 %v418, %v417
    %v438 = vpack.c.b16 %v420, %v419
    %v439 = vpack.c.b16 %v422, %v421
    %v440 = vpack.c.b16 %v424, %v423
    %457 = vmatprep.subr.bf16.mxu0 0
    %458 = vmatpush1.bf16.msra.mxu0 %v425
    %459 = vmatprep.subr.bf16.mxu0 0
    %460 = vmatpush1.bf16.msra.mxu0 %v426
    %461 = vmatprep.subr.bf16.mxu0 0
    %462 = vmatpush1.bf16.msra.mxu0 %v427
    %463 = vmatprep.subr.bf16.mxu0 0
    %464 = vmatpush1.bf16.msra.mxu0 %v428
    %465 = vmatprep.subr.bf16.mxu0 0
    %466 = vmatpush1.bf16.msra.mxu0 %v429
    %467 = vmatprep.subr.bf16.mxu0 0
    %468 = vmatpush1.bf16.msra.mxu0 %v430
    %469 = vmatprep.subr.bf16.mxu0 0
    %470 = vmatpush1.bf16.msra.mxu0 %v431
    %471 = vmatprep.subr.bf16.mxu0 0
    %472 = vmatpush1.bf16.msra.mxu0 %v432
    %473 = vmatprep.subr.bf16.mxu0 0
    %474 = vmatpush1.bf16.msra.mxu0 %v433
    %475 = vmatprep.subr.bf16.mxu0 0
    %476 = vmatpush1.bf16.msra.mxu0 %v434
    %477 = vmatprep.subr.bf16.mxu0 0
    %478 = vmatpush1.bf16.msra.mxu0 %v435
    %479 = vmatprep.subr.bf16.mxu0 0
    %480 = vmatpush1.bf16.msra.mxu0 %v436
    %481 = vmatprep.subr.bf16.mxu0 0
    %482 = vmatpush1.bf16.msra.mxu0 %v437
    %483 = vmatprep.subr.bf16.mxu0 0
    %484 = vmatpush1.bf16.msra.mxu0 %v438
    %485 = vmatprep.subr.bf16.mxu0 0
    %486 = vmatpush1.bf16.msra.mxu0 %v439
    %487 = vmatprep.subr.bf16.mxu0 0
    %488 = vmatpush1.bf16.msra.mxu0 %v440
    %489 = vmatprep.mubr.bf16.mxu0 %v266
    %490 = vmatmul.mubr.bf16.gmra.mrb[0].mxu0 %v265
    %v491 = vpop.f32.mrb[0].mxu0
    %v492 = vadd.f32 %v119, %v491
    %v493 = vpop.f32.mrb[0].mxu0
    %v494 = vpop.f32.mrb[0].mxu0
    %v495 = vadd.f32 %v119, %v494
    %v496 = vpop.f32.mrb[0].mxu0
    %497 = vmatprep.mubr.bf16.mxu0 %v268
    %498 = vmatmul.mubr.bf16.gmra.mrb[0].mxu0 %v267
    %v499 = vpop.f32.mrb[0].mxu0
    %v500 = vadd.f32 %v119, %v499
    %v501 = vpop.f32.mrb[0].mxu0
    %v502 = vpop.f32.mrb[0].mxu0
    %v503 = vadd.f32 %v119, %v502
    %v504 = vpop.f32.mrb[0].mxu0
    %505 = vmatprep.mubr.bf16.mxu0 %v270
    %506 = vmatmul.mubr.bf16.gmra.mrb[0].mxu0 %v269
    %v507 = vpop.f32.mrb[0].mxu0
    %v508 = vadd.f32 %v119, %v507
    %v509 = vpop.f32.mrb[0].mxu0
    %v510 = vpop.f32.mrb[0].mxu0
    %v511 = vadd.f32 %v119, %v510
    %v512 = vpop.f32.mrb[0].mxu0
    %513 = vmatprep.mubr.bf16.mxu0 %v272
    %514 = vmatmul.mubr.bf16.gmra.mrb[0].mxu0 %v271
    %v515 = vpop.f32.mrb[0].mxu0
    %v516 = vadd.f32 %v119, %v515
    %v517 = vpop.f32.mrb[0].mxu0
    %v518 = vpop.f32.mrb[0].mxu0
    %v519 = vadd.f32 %v119, %v518
    %v520 = vpop.f32.mrb[0].mxu0
    %521 = vmatprep.mubr.bf16.mxu0 %v274
    %522 = vmatmul.mubr.bf16.gmra.mrb[0].mxu0 %v273
    %v523 = vpop.f32.mrb[0].mxu0
    %v524 = vadd.f32 %v119, %v523
    %v525 = vpop.f32.mrb[0].mxu0
    %v526 = vpop.f32.mrb[0].mxu0
    %v527 = vadd.f32 %v119, %v526
    %v528 = vpop.f32.mrb[0].mxu0
    %529 = vmatprep.mubr.bf16.mxu0 %v276
    %530 = vmatmul.mubr.bf16.gmra.mrb[0].mxu0 %v275
    %v531 = vpop.f32.mrb[0].mxu0
    %v532 = vadd.f32 %v119, %v531
    %v533 = vpop.f32.mrb[0].mxu0
    %v534 = vpop.f32.mrb[0].mxu0
    %v535 = vadd.f32 %v119, %v534
    %v536 = vpop.f32.mrb[0].mxu0
    %537 = vmatprep.mubr.bf16.mxu0 %v278
    %538 = vmatmul.mubr.bf16.gmra.mrb[0].mxu0 %v277
    %v539 = vpop.f32.mrb[0].mxu0
    %v540 = vadd.f32 %v119, %v539
    %v541 = vpop.f32.mrb[0].mxu0
    %v542 = vpop.f32.mrb[0].mxu0
    %v543 = vadd.f32 %v119, %v542
    %v544 = vpop.f32.mrb[0].mxu0
    %545 = vmatprep.mubr.bf16.mxu0 %v280
    %546 = vmatmul.mubr.bf16.gmra.mrb[0].mxu0 %v279
    %v547 = vpop.f32.mrb[0].mxu0
    %v548 = vadd.f32 %v119, %v547
    %v549 = vpop.f32.mrb[0].mxu0
    %v550 = vpop.f32.mrb[0].mxu0
    %v551 = vadd.f32 %v119, %v550
    %v552 = vpop.f32.mrb[0].mxu0
    %553 = vmatprep.mubr.bf16.mxu0 %v282
    %554 = vmatmul.mubr.bf16.gmra.mrb[0].mxu0 %v281
    %v555 = vpop.f32.mrb[0].mxu0
    %v556 = vadd.f32 %v119, %v555
    %v557 = vpop.f32.mrb[0].mxu0
    %v558 = vpop.f32.mrb[0].mxu0
    %v559 = vadd.f32 %v119, %v558
    %v560 = vpop.f32.mrb[0].mxu0
    %561 = vmatprep.mubr.bf16.mxu0 %v284
    %562 = vmatmul.mubr.bf16.gmra.mrb[0].mxu0 %v283
    %v563 = vpop.f32.mrb[0].mxu0
    %v564 = vadd.f32 %v119, %v563
    %v565 = vpop.f32.mrb[0].mxu0
    %v566 = vpop.f32.mrb[0].mxu0
    %v567 = vadd.f32 %v119, %v566
    %v568 = vpop.f32.mrb[0].mxu0
    %569 = vmatprep.mubr.bf16.mxu0 %v286
    %570 = vmatmul.mubr.bf16.gmra.mrb[0].mxu0 %v285
    %v571 = vpop.f32.mrb[0].mxu0
    %v572 = vadd.f32 %v119, %v571
    %v573 = vpop.f32.mrb[0].mxu0
    %v574 = vpop.f32.mrb[0].mxu0
    %v575 = vadd.f32 %v119, %v574
    %v576 = vpop.f32.mrb[0].mxu0
    %577 = vmatprep.mubr.bf16.mxu0 %v288
    %578 = vmatmul.mubr.bf16.gmra.mrb[0].mxu0 %v287
    %v579 = vpop.f32.mrb[0].mxu0
    %v580 = vadd.f32 %v119, %v579
    %v581 = vpop.f32.mrb[0].mxu0
    %v582 = vpop.f32.mrb[0].mxu0
    %v583 = vadd.f32 %v119, %v582
    %v584 = vpop.f32.mrb[0].mxu0
    %585 = vmatprep.mubr.bf16.mxu0 %v290
    %586 = vmatmul.mubr.bf16.gmra.mrb[0].mxu0 %v289
    %v587 = vpop.f32.mrb[0].mxu0
    %v588 = vadd.f32 %v119, %v587
    %v589 = vpop.f32.mrb[0].mxu0
    %v590 = vpop.f32.mrb[0].mxu0
    %v591 = vadd.f32 %v119, %v590
    %v592 = vpop.f32.mrb[0].mxu0
    %593 = vmatprep.mubr.bf16.mxu0 %v292
    %594 = vmatmul.mubr.bf16.gmra.mrb[0].mxu0 %v291
    %v595 = vpop.f32.mrb[0].mxu0
    %v596 = vadd.f32 %v119, %v595
    %v597 = vpop.f32.mrb[0].mxu0
    %v598 = vpop.f32.mrb[0].mxu0
    %v599 = vadd.f32 %v119, %v598
    %v600 = vpop.f32.mrb[0].mxu0
    %601 = vmatprep.mubr.bf16.mxu0 %v294
    %602 = vmatmul.mubr.bf16.gmra.mrb[0].mxu0 %v293
    %v603 = vpop.f32.mrb[0].mxu0
    %v604 = vadd.f32 %v119, %v603
    %v605 = vpop.f32.mrb[0].mxu0
    %v606 = vpop.f32.mrb[0].mxu0
    %v607 = vadd.f32 %v119, %v606
    %v608 = vpop.f32.mrb[0].mxu0
    %609 = vmatprep.mubr.bf16.mxu0 %v296
    %610 = vmatmul.mubr.bf16.gmra.mrb[0].mxu0 %v295
    %v611 = vpop.f32.mrb[0].mxu0
    %v612 = vadd.f32 %v119, %v611
    %v613 = vpop.f32.mrb[0].mxu0
    %v614 = vpop.f32.mrb[0].mxu0
    %v615 = vadd.f32 %v119, %v614
    %v616 = vpop.f32.mrb[0].mxu0
    %617 = vmatprep.mubr.bf16.mxu0 %v298
    %618 = vmatmul.mubr.bf16.gmra.mrb[0].mxu0 %v297
    %v619 = vpop.f32.mrb[0].mxu0
    %v620 = vadd.f32 %v119, %v619
    %v621 = vpop.f32.mrb[0].mxu0
    %v622 = vpop.f32.mrb[0].mxu0
    %v623 = vadd.f32 %v119, %v622
    %v624 = vpop.f32.mrb[0].mxu0
    %625 = vmatprep.mubr.bf16.mxu0 %v300
    %626 = vmatmul.mubr.bf16.gmra.mrb[0].mxu0 %v299
    %v627 = vpop.f32.mrb[0].mxu0
    %v628 = vadd.f32 %v119, %v627
    %v629 = vpop.f32.mrb[0].mxu0
    %v630 = vpop.f32.mrb[0].mxu0
    %v631 = vadd.f32 %v119, %v630
    %v632 = vpop.f32.mrb[0].mxu0
    %633 = vmatprep.mubr.bf16.mxu0 %v302
    %634 = vmatmul.mubr.bf16.gmra.mrb[0].mxu0 %v301
    %v635 = vpop.f32.mrb[0].mxu0
    %v636 = vadd.f32 %v119, %v635
    %v637 = vpop.f32.mrb[0].mxu0
    %v638 = vpop.f32.mrb[0].mxu0
    %v639 = vadd.f32 %v119, %v638
    %v640 = vpop.f32.mrb[0].mxu0
    %641 = vmatprep.mubr.bf16.mxu0 %v304
    %642 = vmatmul.mubr.bf16.gmra.mrb[0].mxu0 %v303
    %v643 = vpop.f32.mrb[0].mxu0
    %v644 = vadd.f32 %v119, %v643
    %v645 = vpop.f32.mrb[0].mxu0
    %v646 = vpop.f32.mrb[0].mxu0
    %v647 = vadd.f32 %v119, %v646
    %v648 = vpop.f32.mrb[0].mxu0
    %649 = vmatprep.mubr.bf16.mxu0 %v306
    %650 = vmatmul.mubr.bf16.gmra.mrb[0].mxu0 %v305
    %v651 = vpop.f32.mrb[0].mxu0
    %v652 = vadd.f32 %v119, %v651
    %v653 = vpop.f32.mrb[0].mxu0
    %v654 = vpop.f32.mrb[0].mxu0
    %v655 = vadd.f32 %v119, %v654
    %v656 = vpop.f32.mrb[0].mxu0
    %657 = vmatprep.mubr.bf16.mxu0 %v308
    %658 = vmatmul.mubr.bf16.gmra.mrb[0].mxu0 %v307
    %v659 = vpop.f32.mrb[0].mxu0
    %v660 = vadd.f32 %v119, %v659
    %v661 = vpop.f32.mrb[0].mxu0
    %v662 = vpop.f32.mrb[0].mxu0
    %v663 = vadd.f32 %v119, %v662
    %v664 = vpop.f32.mrb[0].mxu0
    %665 = vmatprep.mubr.bf16.mxu0 %v310
    %666 = vmatmul.mubr.bf16.gmra.mrb[0].mxu0 %v309
    %v667 = vpop.f32.mrb[0].mxu0
    %v668 = vadd.f32 %v119, %v667
    %v669 = vpop.f32.mrb[0].mxu0
    %v670 = vpop.f32.mrb[0].mxu0
    %v671 = vadd.f32 %v119, %v670
    %v672 = vpop.f32.mrb[0].mxu0
    %673 = vmatprep.mubr.bf16.mxu0 %v312
    %674 = vmatmul.mubr.bf16.gmra.mrb[0].mxu0 %v311
    %v675 = vpop.f32.mrb[0].mxu0
    %v676 = vadd.f32 %v119, %v675
    %v677 = vpop.f32.mrb[0].mxu0
    %v678 = vpop.f32.mrb[0].mxu0
    %v679 = vadd.f32 %v119, %v678
    %v680 = vpop.f32.mrb[0].mxu0
    %681 = vdwg.mxu0
    %v682 = vmax.f32 %v492, 0.0
    %v683 = vmax.f32 %v495, 0.0
    %v684 = vmax.f32 %v500, 0.0
    %v685 = vmax.f32 %v503, 0.0
    %v686 = vmax.f32 %v508, 0.0
    %v687 = vmax.f32 %v511, 0.0
    %v688 = vmax.f32 %v516, 0.0
    %v689 = vmax.f32 %v519, 0.0
    %v690 = vmax.f32 %v524, 0.0
    %v691 = vmax.f32 %v527, 0.0
    %v692 = vmax.f32 %v532, 0.0
    %v693 = vmax.f32 %v535, 0.0
    %v694 = vmax.f32 %v540, 0.0
    %v695 = vmax.f32 %v543, 0.0
    %v696 = vmax.f32 %v548, 0.0
    %v697 = vmax.f32 %v551, 0.0
    %v698 = vmax.f32 %v556, 0.0
    %v699 = vmax.f32 %v559, 0.0
    %v700 = vmax.f32 %v564, 0.0
    %v701 = vmax.f32 %v567, 0.0
    %v702 = vmax.f32 %v572, 0.0
    %v703 = vmax.f32 %v575, 0.0
    %v704 = vmax.f32 %v580, 0.0
    %v705 = vmax.f32 %v583, 0.0
    %v706 = vmax.f32 %v588, 0.0
    %v707 = vmax.f32 %v591, 0.0
    %v708 = vmax.f32 %v596, 0.0
    %v709 = vmax.f32 %v599, 0.0
    %v710 = vmax.f32 %v604, 0.0
    %v711 = vmax.f32 %v607, 0.0
    %v712 = vmax.f32 %v612, 0.0
    %v713 = vmax.f32 %v615, 0.0
    %v714 = vmax.f32 %v620, 0.0
    %v715 = vmax.f32 %v623, 0.0
    %v716 = vmax.f32 %v628, 0.0
    %v717 = vmax.f32 %v631, 0.0
    %v718 = vmax.f32 %v636, 0.0
    %v719 = vmax.f32 %v639, 0.0
    %v720 = vmax.f32 %v644, 0.0
    %v721 = vmax.f32 %v647, 0.0
    %v722 = vmax.f32 %v652, 0.0
    %v723 = vmax.f32 %v655, 0.0
    %v724 = vmax.f32 %v660, 0.0
    %v725 = vmax.f32 %v663, 0.0
    %v726 = vmax.f32 %v668, 0.0
    %v727 = vmax.f32 %v671, 0.0
    %v728 = vmax.f32 %v676, 0.0
    %v729 = vmax.f32 %v679, 0.0
    %v730 = vpack.c.bf16 %v683, %v682
    %v731 = vpack.c.bf16 %v684, %v684
    %v732 = vld [vmem:[%s3] sm:$0xf]
    %v733 = vld [vmem:[%s3 + $0x4] sm:$0xf]
    %v734 = vld [vmem:[%s3 + $0x8] sm:$0xf]
    %v735 = vld [vmem:[%s3 + $0xc] sm:$0xf]
    %v736 = vpack.c.bf16 %v686, %v685
    %v737 = vpack.c.bf16 %v687, %v687
    %s738 = scalar_lea.vmem %s3, 16
    %v739 = vld [vmem:[%s738] sm:$0xf]
    %v740 = vld [vmem:[%s738 + $0x4] sm:$0xf]
    %v741 = vld [vmem:[%s738 + $0x8] sm:$0xf]
    %v742 = vld [vmem:[%s738 + $0xc] sm:$0xf]
    %v747 = vunpack.c.l.b16 %v739
    %v748 = vunpack.c.l.b16 %v740
    %v749 = vunpack.c.l.b16 %v741
    %v750 = vunpack.c.l.b16 %v742
    %v751 = vpack.c.b16 %v748, %v747
    %v752 = vpack.c.b16 %v750, %v749
    %vm755 = vcmask 261120
    %v757 = vsel %vm755, %v736, 0
    %v760 = vsel %vm755, %v737, 0
    %762 = vmatprep.subr.bf16.mxu0 0
    %763 = vmatpush1.bf16.msra.mxu0 %v751
    %764 = vmatprep.subr.bf16.mxu0 0
    %765 = vmatpush1.bf16.msra.mxu0 %v752
    %766 = vmatprep.subr.bf16.mxu0 0
    %767 = vmatpush1.bf16.msra.mxu0 0
    %768 = vmatprep.subr.bf16.mxu0 0
    %769 = vmatpush1.bf16.msra.mxu0 0
    %770 = vmatprep.subr.bf16.mxu0 0
    %771 = vmatpush1.bf16.msra.mxu0 0
    %772 = vmatprep.subr.bf16.mxu0 0
    %773 = vmatpush1.bf16.msra.mxu0 0
    %774 = vmatprep.subr.bf16.mxu0 0
    %775 = vmatpush1.bf16.msra.mxu0 0
    %776 = vmatprep.subr.bf16.mxu0 0
    %777 = vmatpush1.bf16.msra.mxu0 0
    %778 = vmatprep.subr.bf16.mxu0 0
    %779 = vmatpush1.bf16.msra.mxu0 0
    %780 = vmatprep.subr.bf16.mxu0 0
    %781 = vmatpush1.bf16.msra.mxu0 0
    %782 = vmatprep.subr.bf16.mxu0 0
    %783 = vmatpush1.bf16.msra.mxu0 0
    %784 = vmatprep.subr.bf16.mxu0 0
    %785 = vmatpush1.bf16.msra.mxu0 0
    %786 = vmatprep.subr.bf16.mxu0 0
    %787 = vmatpush1.bf16.msra.mxu0 0
    %788 = vmatprep.subr.bf16.mxu0 0
    %789 = vmatpush1.bf16.msra.mxu0 0
    %790 = vmatprep.subr.bf16.mxu0 0
    %791 = vmatpush1.bf16.msra.mxu0 0
    %792 = vmatprep.subr.bf16.mxu0 0
    %793 = vmatpush1.bf16.msra.mxu0 0
    %794 = vmatprep.mubr.bf16.mxu0 0
    %795 = vmatmul.mubr.bf16.gmra.mrb[0].mxu0 %v757
    %v796 = vpop.f32.mrb[0].mxu0
    %v797 = vadd.f32 0.0, %v796
    %v798 = vpop.f32.mrb[0].mxu0
    %v799 = vpop.f32.mrb[0].mxu0
    %v800 = vadd.f32 0.0, %v799
    %v801 = vpop.f32.mrb[0].mxu0
    %802 = vmatprep.mubr.bf16.mxu0 0
    %803 = vmatmul.mubr.bf16.gmra.mrb[0].mxu0 %v760
    %v804 = vpop.f32.mrb[0].mxu0
    %v805 = vadd.f32 0.0, %v804
    %v806 = vpop.f32.mrb[0].mxu0
    %v807 = vpop.f32.mrb[0].mxu0
    %v808 = vpop.f32.mrb[0].mxu0
    %809 = vdwg.mxu0
    %v814 = vunpack.c.l.b16 %v732
    %v815 = vunpack.c.l.b16 %v733
    %v816 = vunpack.c.l.b16 %v734
    %v817 = vunpack.c.l.b16 %v735
    %v818 = vpack.c.b16 %v815, %v814
    %v819 = vpack.c.b16 %v817, %v816
    %v823 = vsel %vm755, %v730, 0
    %v826 = vsel %vm755, %v731, 0
    %828 = vmatprep.subr.bf16.mxu0 0
    %829 = vmatpush1.bf16.msra.mxu0 %v818
    %830 = vmatprep.subr.bf16.mxu0 0
    %831 = vmatpush1.bf16.msra.mxu0 %v819
    %832 = vmatprep.subr.bf16.mxu0 0
    %833 = vmatpush1.bf16.msra.mxu0 0
    %834 = vmatprep.subr.bf16.mxu0 0
    %835 = vmatpush1.bf16.msra.mxu0 0
    %836 = vmatprep.subr.bf16.mxu0 0
    %837 = vmatpush1.bf16.msra.mxu0 0
    %838 = vmatprep.subr.bf16.mxu0 0
    %839 = vmatpush1.bf16.msra.mxu0 0
    %840 = vmatprep.subr.bf16.mxu0 0
    %841 = vmatpush1.bf16.msra.mxu0 0
    %842 = vmatprep.subr.bf16.mxu0 0
    %843 = vmatpush1.bf16.msra.mxu0 0
    %844 = vmatprep.subr.bf16.mxu0 0
    %845 = vmatpush1.bf16.msra.mxu0 0
    %846 = vmatprep.subr.bf16.mxu0 0
    %847 = vmatpush1.bf16.msra.mxu0 0
    %848 = vmatprep.subr.bf16.mxu0 0
    %849 = vmatpush1.bf16.msra.mxu0 0
    %850 = vmatprep.subr.bf16.mxu0 0
    %851 = vmatpush1.bf16.msra.mxu0 0
    %852 = vmatprep.subr.bf16.mxu0 0
    %853 = vmatpush1.bf16.msra.mxu0 0
    %854 = vmatprep.subr.bf16.mxu0 0
    %855 = vmatpush1.bf16.msra.mxu0 0
    %856 = vmatprep.subr.bf16.mxu0 0
    %857 = vmatpush1.bf16.msra.mxu0 0
    %858 = vmatprep.subr.bf16.mxu0 0
    %859 = vmatpush1.bf16.msra.mxu0 0
    %860 = vmatprep.mubr.bf16.mxu0 0
    %861 = vmatmul.mubr.bf16.gmra.mrb[0].mxu0 %v823
    %v862 = vpop.f32.mrb[0].mxu0
    %v863 = vadd.f32 %v797, %v862
    %v864 = vpop.f32.mrb[0].mxu0
    %v865 = vpop.f32.mrb[0].mxu0
    %v866 = vadd.f32 %v800, %v865
    %v867 = vpop.f32.mrb[0].mxu0
    %868 = vmatprep.mubr.bf16.mxu0 0
    %869 = vmatmul.mubr.bf16.gmra.mrb[0].mxu0 %v826
    %v870 = vpop.f32.mrb[0].mxu0
    %v871 = vadd.f32 %v805, %v870
    %v872 = vpop.f32.mrb[0].mxu0
    %v873 = vpop.f32.mrb[0].mxu0
    %v874 = vpop.f32.mrb[0].mxu0
    %875 = vdwg.mxu0
    %v876 = vpack.c.bf16 %v689, %v688
    %v877 = vpack.c.bf16 %v690, %v690
    %s878 = scalar_lea.vmem %s3, 32
    %v879 = vld [vmem:[%s878] sm:$0xf]
    %v880 = vld [vmem:[%s878 + $0x4] sm:$0xf]
    %v881 = vld [vmem:[%s878 + $0x8] sm:$0xf]
    %v882 = vld [vmem:[%s878 + $0xc] sm:$0xf]
    %v887 = vunpack.c.l.b16 %v879
    %v888 = vunpack.c.l.b16 %v880
    %v889 = vunpack.c.l.b16 %v881
    %v890 = vunpack.c.l.b16 %v882
    %v891 = vpack.c.b16 %v888, %v887
    %v892 = vpack.c.b16 %v890, %v889
    %v896 = vsel %vm755, %v876, 0
    %v899 = vsel %vm755, %v877, 0
    %901 = vmatprep.subr.bf16.mxu0 0
    %902 = vmatpush1.bf16.msra.mxu0 %v891
    %903 = vmatprep.subr.bf16.mxu0 0
    %904 = vmatpush1.bf16.msra.mxu0 %v892
    %905 = vmatprep.subr.bf16.mxu0 0
    %906 = vmatpush1.bf16.msra.mxu0 0
    %907 = vmatprep.subr.bf16.mxu0 0
    %908 = vmatpush1.bf16.msra.mxu0 0
    %909 = vmatprep.subr.bf16.mxu0 0
    %910 = vmatpush1.bf16.msra.mxu0 0
    %911 = vmatprep.subr.bf16.mxu0 0
    %912 = vmatpush1.bf16.msra.mxu0 0
    %913 = vmatprep.subr.bf16.mxu0 0
    %914 = vmatpush1.bf16.msra.mxu0 0
    %915 = vmatprep.subr.bf16.mxu0 0
    %916 = vmatpush1.bf16.msra.mxu0 0
    %917 = vmatprep.subr.bf16.mxu0 0
    %918 = vmatpush1.bf16.msra.mxu0 0
    %919 = vmatprep.subr.bf16.mxu0 0
    %920 = vmatpush1.bf16.msra.mxu0 0
    %921 = vmatprep.subr.bf16.mxu0 0
    %922 = vmatpush1.bf16.msra.mxu0 0
    %923 = vmatprep.subr.bf16.mxu0 0
    %924 = vmatpush1.bf16.msra.mxu0 0
    %925 = vmatprep.subr.bf16.mxu0 0
    %926 = vmatpush1.bf16.msra.mxu0 0
    %927 = vmatprep.subr.bf16.mxu0 0
    %928 = vmatpush1.bf16.msra.mxu0 0
    %929 = vmatprep.subr.bf16.mxu0 0
    %930 = vmatpush1.bf16.msra.mxu0 0
    %931 = vmatprep.subr.bf16.mxu0 0
    %932 = vmatpush1.bf16.msra.mxu0 0
    %933 = vmatprep.mubr.bf16.mxu0 0
    %934 = vmatmul.mubr.bf16.gmra.mrb[0].mxu0 %v896
    %v935 = vpop.f32.mrb[0].mxu0
    %v936 = vadd.f32 0.0, %v935
    %v937 = vpop.f32.mrb[0].mxu0
    %v938 = vpop.f32.mrb[0].mxu0
    %v939 = vadd.f32 0.0, %v938
    %v940 = vpop.f32.mrb[0].mxu0
    %941 = vmatprep.mubr.bf16.mxu0 0
    %942 = vmatmul.mubr.bf16.gmra.mrb[0].mxu0 %v899
    %v943 = vpop.f32.mrb[0].mxu0
    %v944 = vadd.f32 0.0, %v943
    %v945 = vpop.f32.mrb[0].mxu0
    %v946 = vpop.f32.mrb[0].mxu0
    %v947 = vpop.f32.mrb[0].mxu0
    %948 = vdwg.mxu0
    %v949 = vadd.f32 %v863, %v936
    %v950 = vadd.f32 %v866, %v939
    %v951 = vadd.f32 %v871, %v944
    %v952 = vpack.c.bf16 %v692, %v691
    %v953 = vpack.c.bf16 %v693, %v693
    %s954 = scalar_lea.vmem %s3, 48
    %v955 = vld [vmem:[%s954] sm:$0xf]
    %v956 = vld [vmem:[%s954 + $0x4] sm:$0xf]
    %v957 = vld [vmem:[%s954 + $0x8] sm:$0xf]
    %v958 = vld [vmem:[%s954 + $0xc] sm:$0xf]
    %v963 = vunpack.c.l.b16 %v955
    %v964 = vunpack.c.l.b16 %v956
    %v965 = vunpack.c.l.b16 %v957
    %v966 = vunpack.c.l.b16 %v958
    %v967 = vpack.c.b16 %v964, %v963
    %v968 = vpack.c.b16 %v966, %v965
    %v972 = vsel %vm755, %v952, 0
    %v975 = vsel %vm755, %v953, 0
    %977 = vmatprep.subr.bf16.mxu0 0
    %978 = vmatpush1.bf16.msra.mxu0 %v967
    %979 = vmatprep.subr.bf16.mxu0 0
    %980 = vmatpush1.bf16.msra.mxu0 %v968
    %981 = vmatprep.subr.bf16.mxu0 0
    %982 = vmatpush1.bf16.msra.mxu0 0
    %983 = vmatprep.subr.bf16.mxu0 0
    %984 = vmatpush1.bf16.msra.mxu0 0
    %985 = vmatprep.subr.bf16.mxu0 0
    %986 = vmatpush1.bf16.msra.mxu0 0
    %987 = vmatprep.subr.bf16.mxu0 0
    %988 = vmatpush1.bf16.msra.mxu0 0
    %989 = vmatprep.subr.bf16.mxu0 0
    %990 = vmatpush1.bf16.msra.mxu0 0
    %991 = vmatprep.subr.bf16.mxu0 0
    %992 = vmatpush1.bf16.msra.mxu0 0
    %993 = vmatprep.subr.bf16.mxu0 0
    %994 = vmatpush1.bf16.msra.mxu0 0
    %995 = vmatprep.subr.bf16.mxu0 0
    %996 = vmatpush1.bf16.msra.mxu0 0
    %997 = vmatprep.subr.bf16.mxu0 0
    %998 = vmatpush1.bf16.msra.mxu0 0
    %999 = vmatprep.subr.bf16.mxu0 0
    %1000 = vmatpush1.bf16.msra.mxu0 0
    %1001 = vmatprep.subr.bf16.mxu0 0
    %1002 = vmatpush1.bf16.msra.mxu0 0
    %1003 = vmatprep.subr.bf16.mxu0 0
    %1004 = vmatpush1.bf16.msra.mxu0 0
    %1005 = vmatprep.subr.bf16.mxu0 0
    %1006 = vmatpush1.bf16.msra.mxu0 0
    %1007 = vmatprep.subr.bf16.mxu0 0
    %1008 = vmatpush1.bf16.msra.mxu0 0
    %1009 = vmatprep.mubr.bf16.mxu0 0
    %1010 = vmatmul.mubr.bf16.gmra.mrb[0].mxu0 %v972
    %v1011 = vpop.f32.mrb[0].mxu0
    %v1012 = vadd.f32 0.0, %v1011
    %v1013 = vpop.f32.mrb[0].mxu0
    %v1014 = vpop.f32.mrb[0].mxu0
    %v1015 = vadd.f32 0.0, %v1014
    %v1016 = vpop.f32.mrb[0].mxu0
    %1017 = vmatprep.mubr.bf16.mxu0 0
    %1018 = vmatmul.mubr.bf16.gmra.mrb[0].mxu0 %v975
    %v1019 = vpop.f32.mrb[0].mxu0
    %v1020 = vadd.f32 0.0, %v1019
    %v1021 = vpop.f32.mrb[0].mxu0
    %v1022 = vpop.f32.mrb[0].mxu0
    %v1023 = vpop.f32.mrb[0].mxu0
    %1024 = vdwg.mxu0
    %v1025 = vadd.f32 %v949, %v1012
    %v1026 = vadd.f32 %v950, %v1015
    %v1027 = vadd.f32 %v951, %v1020
    %v1028 = vpack.c.bf16 %v695, %v694
    %v1029 = vpack.c.bf16 %v696, %v696
    %s1030 = scalar_lea.vmem %s3, 64
    %v1031 = vld [vmem:[%s1030] sm:$0xf]
    %v1032 = vld [vmem:[%s1030 + $0x4] sm:$0xf]
    %v1033 = vld [vmem:[%s1030 + $0x8] sm:$0xf]
    %v1034 = vld [vmem:[%s1030 + $0xc] sm:$0xf]
    %v1039 = vunpack.c.l.b16 %v1031
    %v1040 = vunpack.c.l.b16 %v1032
    %v1041 = vunpack.c.l.b16 %v1033
    %v1042 = vunpack.c.l.b16 %v1034
    %v1043 = vpack.c.b16 %v1040, %v1039
    %v1044 = vpack.c.b16 %v1042, %v1041
    %v1048 = vsel %vm755, %v1028, 0
    %v1051 = vsel %vm755, %v1029, 0
    %1053 = vmatprep.subr.bf16.mxu0 0
    %1054 = vmatpush1.bf16.msra.mxu0 %v1043
    %1055 = vmatprep.subr.bf16.mxu0 0
    %1056 = vmatpush1.bf16.msra.mxu0 %v1044
    %1057 = vmatprep.subr.bf16.mxu0 0
    %1058 = vmatpush1.bf16.msra.mxu0 0
    %1059 = vmatprep.subr.bf16.mxu0 0
    %1060 = vmatpush1.bf16.msra.mxu0 0
    %1061 = vmatprep.subr.bf16.mxu0 0
    %1062 = vmatpush1.bf16.msra.mxu0 0
    %1063 = vmatprep.subr.bf16.mxu0 0
    %1064 = vmatpush1.bf16.msra.mxu0 0
    %1065 = vmatprep.subr.bf16.mxu0 0
    %1066 = vmatpush1.bf16.msra.mxu0 0
    %1067 = vmatprep.subr.bf16.mxu0 0
    %1068 = vmatpush1.bf16.msra.mxu0 0
    %1069 = vmatprep.subr.bf16.mxu0 0
    %1070 = vmatpush1.bf16.msra.mxu0 0
    %1071 = vmatprep.subr.bf16.mxu0 0
    %1072 = vmatpush1.bf16.msra.mxu0 0
    %1073 = vmatprep.subr.bf16.mxu0 0
    %1074 = vmatpush1.bf16.msra.mxu0 0
    %1075 = vmatprep.subr.bf16.mxu0 0
    %1076 = vmatpush1.bf16.msra.mxu0 0
    %1077 = vmatprep.subr.bf16.mxu0 0
    %1078 = vmatpush1.bf16.msra.mxu0 0
    %1079 = vmatprep.subr.bf16.mxu0 0
    %1080 = vmatpush1.bf16.msra.mxu0 0
    %1081 = vmatprep.subr.bf16.mxu0 0
    %1082 = vmatpush1.bf16.msra.mxu0 0
    %1083 = vmatprep.subr.bf16.mxu0 0
    %1084 = vmatpush1.bf16.msra.mxu0 0
    %1085 = vmatprep.mubr.bf16.mxu0 0
    %1086 = vmatmul.mubr.bf16.gmra.mrb[0].mxu0 %v1048
    %v1087 = vpop.f32.mrb[0].mxu0
    %v1088 = vadd.f32 0.0, %v1087
    %v1089 = vpop.f32.mrb[0].mxu0
    %v1090 = vpop.f32.mrb[0].mxu0
    %v1091 = vadd.f32 0.0, %v1090
    %v1092 = vpop.f32.mrb[0].mxu0
    %1093 = vmatprep.mubr.bf16.mxu0 0
    %1094 = vmatmul.mubr.bf16.gmra.mrb[0].mxu0 %v1051
    %v1095 = vpop.f32.mrb[0].mxu0
    %v1096 = vadd.f32 0.0, %v1095
    %v1097 = vpop.f32.mrb[0].mxu0
    %v1098 = vpop.f32.mrb[0].mxu0
    %v1099 = vpop.f32.mrb[0].mxu0
    %1100 = vdwg.mxu0
    %v1101 = vadd.f32 %v1025, %v1088
    %v1102 = vadd.f32 %v1026, %v1091
    %v1103 = vadd.f32 %v1027, %v1096
    %v1104 = vpack.c.bf16 %v698, %v697
    %v1105 = vpack.c.bf16 %v699, %v699
    %s1106 = scalar_lea.vmem %s3, 80
    %v1107 = vld [vmem:[%s1106] sm:$0xf]
    %v1108 = vld [vmem:[%s1106 + $0x4] sm:$0xf]
    %v1109 = vld [vmem:[%s1106 + $0x8] sm:$0xf]
    %v1110 = vld [vmem:[%s1106 + $0xc] sm:$0xf]
    %v1115 = vunpack.c.l.b16 %v1107
    %v1116 = vunpack.c.l.b16 %v1108
    %v1117 = vunpack.c.l.b16 %v1109
    %v1118 = vunpack.c.l.b16 %v1110
    %v1119 = vpack.c.b16 %v1116, %v1115
    %v1120 = vpack.c.b16 %v1118, %v1117
    %v1124 = vsel %vm755, %v1104, 0
    %v1127 = vsel %vm755, %v1105, 0
    %1129 = vmatprep.subr.bf16.mxu0 0
    %1130 = vmatpush1.bf16.msra.mxu0 %v1119
    %1131 = vmatprep.subr.bf16.mxu0 0
    %1132 = vmatpush1.bf16.msra.mxu0 %v1120
    %1133 = vmatprep.subr.bf16.mxu0 0
    %1134 = vmatpush1.bf16.msra.mxu0 0
    %1135 = vmatprep.subr.bf16.mxu0 0
    %1136 = vmatpush1.bf16.msra.mxu0 0
    %1137 = vmatprep.subr.bf16.mxu0 0
    %1138 = vmatpush1.bf16.msra.mxu0 0
    %1139 = vmatprep.subr.bf16.mxu0 0
    %1140 = vmatpush1.bf16.msra.mxu0 0
    %1141 = vmatprep.subr.bf16.mxu0 0
    %1142 = vmatpush1.bf16.msra.mxu0 0
    %1143 = vmatprep.subr.bf16.mxu0 0
    %1144 = vmatpush1.bf16.msra.mxu0 0
    %1145 = vmatprep.subr.bf16.mxu0 0
    %1146 = vmatpush1.bf16.msra.mxu0 0
    %1147 = vmatprep.subr.bf16.mxu0 0
    %1148 = vmatpush1.bf16.msra.mxu0 0
    %1149 = vmatprep.subr.bf16.mxu0 0
    %1150 = vmatpush1.bf16.msra.mxu0 0
    %1151 = vmatprep.subr.bf16.mxu0 0
    %1152 = vmatpush1.bf16.msra.mxu0 0
    %1153 = vmatprep.subr.bf16.mxu0 0
    %1154 = vmatpush1.bf16.msra.mxu0 0
    %1155 = vmatprep.subr.bf16.mxu0 0
    %1156 = vmatpush1.bf16.msra.mxu0 0
    %1157 = vmatprep.subr.bf16.mxu0 0
    %1158 = vmatpush1.bf16.msra.mxu0 0
    %1159 = vmatprep.subr.bf16.mxu0 0
    %1160 = vmatpush1.bf16.msra.mxu0 0
    %1161 = vmatprep.mubr.bf16.mxu0 0
    %1162 = vmatmul.mubr.bf16.gmra.mrb[0].mxu0 %v1124
    %v1163 = vpop.f32.mrb[0].mxu0
    %v1164 = vadd.f32 0.0, %v1163
    %v1165 = vpop.f32.mrb[0].mxu0
    %v1166 = vpop.f32.mrb[0].mxu0
    %v1167 = vadd.f32 0.0, %v1166
    %v1168 = vpop.f32.mrb[0].mxu0
    %1169 = vmatprep.mubr.bf16.mxu0 0
    %1170 = vmatmul.mubr.bf16.gmra.mrb[0].mxu0 %v1127
    %v1171 = vpop.f32.mrb[0].mxu0
    %v1172 = vadd.f32 0.0, %v1171
    %v1173 = vpop.f32.mrb[0].mxu0
    %v1174 = vpop.f32.mrb[0].mxu0
    %v1175 = vpop.f32.mrb[0].mxu0
    %1176 = vdwg.mxu0
    %v1177 = vadd.f32 %v1101, %v1164
    %v1178 = vadd.f32 %v1102, %v1167
    %v1179 = vadd.f32 %v1103, %v1172
    %v1180 = vpack.c.bf16 %v701, %v700
    %v1181 = vpack.c.bf16 %v702, %v702
    %s1182 = scalar_lea.vmem %s3, 96
    %v1183 = vld [vmem:[%s1182] sm:$0xf]
    %v1184 = vld [vmem:[%s1182 + $0x4] sm:$0xf]
    %v1185 = vld [vmem:[%s1182 + $0x8] sm:$0xf]
    %v1186 = vld [vmem:[%s1182 + $0xc] sm:$0xf]
    %v1191 = vunpack.c.l.b16 %v1183
    %v1192 = vunpack.c.l.b16 %v1184
    %v1193 = vunpack.c.l.b16 %v1185
    %v1194 = vunpack.c.l.b16 %v1186
    %v1195 = vpack.c.b16 %v1192, %v1191
    %v1196 = vpack.c.b16 %v1194, %v1193
    %v1200 = vsel %vm755, %v1180, 0
    %v1203 = vsel %vm755, %v1181, 0
    %1205 = vmatprep.subr.bf16.mxu0 0
    %1206 = vmatpush1.bf16.msra.mxu0 %v1195
    %1207 = vmatprep.subr.bf16.mxu0 0
    %1208 = vmatpush1.bf16.msra.mxu0 %v1196
    %1209 = vmatprep.subr.bf16.mxu0 0
    %1210 = vmatpush1.bf16.msra.mxu0 0
    %1211 = vmatprep.subr.bf16.mxu0 0
    %1212 = vmatpush1.bf16.msra.mxu0 0
    %1213 = vmatprep.subr.bf16.mxu0 0
    %1214 = vmatpush1.bf16.msra.mxu0 0
    %1215 = vmatprep.subr.bf16.mxu0 0
    %1216 = vmatpush1.bf16.msra.mxu0 0
    %1217 = vmatprep.subr.bf16.mxu0 0
    %1218 = vmatpush1.bf16.msra.mxu0 0
    %1219 = vmatprep.subr.bf16.mxu0 0
    %1220 = vmatpush1.bf16.msra.mxu0 0
    %1221 = vmatprep.subr.bf16.mxu0 0
    %1222 = vmatpush1.bf16.msra.mxu0 0
    %1223 = vmatprep.subr.bf16.mxu0 0
    %1224 = vmatpush1.bf16.msra.mxu0 0
    %1225 = vmatprep.subr.bf16.mxu0 0
    %1226 = vmatpush1.bf16.msra.mxu0 0
    %1227 = vmatprep.subr.bf16.mxu0 0
    %1228 = vmatpush1.bf16.msra.mxu0 0
    %1229 = vmatprep.subr.bf16.mxu0 0
    %1230 = vmatpush1.bf16.msra.mxu0 0
    %1231 = vmatprep.subr.bf16.mxu0 0
    %1232 = vmatpush1.bf16.msra.mxu0 0
    %1233 = vmatprep.subr.bf16.mxu0 0
    %1234 = vmatpush1.bf16.msra.mxu0 0
    %1235 = vmatprep.subr.bf16.mxu0 0
    %1236 = vmatpush1.bf16.msra.mxu0 0
    %1237 = vmatprep.mubr.bf16.mxu0 0
    %1238 = vmatmul.mubr.bf16.gmra.mrb[0].mxu0 %v1200
    %v1239 = vpop.f32.mrb[0].mxu0
    %v1240 = vadd.f32 0.0, %v1239
    %v1241 = vpop.f32.mrb[0].mxu0
    %v1242 = vpop.f32.mrb[0].mxu0
    %v1243 = vadd.f32 0.0, %v1242
    %v1244 = vpop.f32.mrb[0].mxu0
    %1245 = vmatprep.mubr.bf16.mxu0 0
    %1246 = vmatmul.mubr.bf16.gmra.mrb[0].mxu0 %v1203
    %v1247 = vpop.f32.mrb[0].mxu0
    %v1248 = vadd.f32 0.0, %v1247
    %v1249 = vpop.f32.mrb[0].mxu0
    %v1250 = vpop.f32.mrb[0].mxu0
    %v1251 = vpop.f32.mrb[0].mxu0
    %1252 = vdwg.mxu0
    %v1253 = vadd.f32 %v1177, %v1240
    %v1254 = vadd.f32 %v1178, %v1243
    %v1255 = vadd.f32 %v1179, %v1248
    %v1256 = vpack.c.bf16 %v704, %v703
    %v1257 = vpack.c.bf16 %v705, %v705
    %s1258 = scalar_lea.vmem %s3, 112
    %v1259 = vld [vmem:[%s1258] sm:$0xf]
    %v1260 = vld [vmem:[%s1258 + $0x4] sm:$0xf]
    %v1261 = vld [vmem:[%s1258 + $0x8] sm:$0xf]
    %v1262 = vld [vmem:[%s1258 + $0xc] sm:$0xf]
    %v1267 = vunpack.c.l.b16 %v1259
    %v1268 = vunpack.c.l.b16 %v1260
    %v1269 = vunpack.c.l.b16 %v1261
    %v1270 = vunpack.c.l.b16 %v1262
    %v1271 = vpack.c.b16 %v1268, %v1267
    %v1272 = vpack.c.b16 %v1270, %v1269
    %v1276 = vsel %vm755, %v1256, 0
    %v1279 = vsel %vm755, %v1257, 0
    %1281 = vmatprep.subr.bf16.mxu0 0
    %1282 = vmatpush1.bf16.msra.mxu0 %v1271
    %1283 = vmatprep.subr.bf16.mxu0 0
    %1284 = vmatpush1.bf16.msra.mxu0 %v1272
    %1285 = vmatprep.subr.bf16.mxu0 0
    %1286 = vmatpush1.bf16.msra.mxu0 0
    %1287 = vmatprep.subr.bf16.mxu0 0
    %1288 = vmatpush1.bf16.msra.mxu0 0
    %1289 = vmatprep.subr.bf16.mxu0 0
    %1290 = vmatpush1.bf16.msra.mxu0 0
    %1291 = vmatprep.subr.bf16.mxu0 0
    %1292 = vmatpush1.bf16.msra.mxu0 0
    %1293 = vmatprep.subr.bf16.mxu0 0
    %1294 = vmatpush1.bf16.msra.mxu0 0
    %1295 = vmatprep.subr.bf16.mxu0 0
    %1296 = vmatpush1.bf16.msra.mxu0 0
    %1297 = vmatprep.subr.bf16.mxu0 0
    %1298 = vmatpush1.bf16.msra.mxu0 0
    %1299 = vmatprep.subr.bf16.mxu0 0
    %1300 = vmatpush1.bf16.msra.mxu0 0
    %1301 = vmatprep.subr.bf16.mxu0 0
    %1302 = vmatpush1.bf16.msra.mxu0 0
    %1303 = vmatprep.subr.bf16.mxu0 0
    %1304 = vmatpush1.bf16.msra.mxu0 0
    %1305 = vmatprep.subr.bf16.mxu0 0
    %1306 = vmatpush1.bf16.msra.mxu0 0
    %1307 = vmatprep.subr.bf16.mxu0 0
    %1308 = vmatpush1.bf16.msra.mxu0 0
    %1309 = vmatprep.subr.bf16.mxu0 0
    %1310 = vmatpush1.bf16.msra.mxu0 0
    %1311 = vmatprep.subr.bf16.mxu0 0
    %1312 = vmatpush1.bf16.msra.mxu0 0
    %1313 = vmatprep.mubr.bf16.mxu0 0
    %1314 = vmatmul.mubr.bf16.gmra.mrb[0].mxu0 %v1276
    %v1315 = vpop.f32.mrb[0].mxu0
    %v1316 = vadd.f32 0.0, %v1315
    %v1317 = vpop.f32.mrb[0].mxu0
    %v1318 = vpop.f32.mrb[0].mxu0
    %v1319 = vadd.f32 0.0, %v1318
    %v1320 = vpop.f32.mrb[0].mxu0
    %1321 = vmatprep.mubr.bf16.mxu0 0
    %1322 = vmatmul.mubr.bf16.gmra.mrb[0].mxu0 %v1279
    %v1323 = vpop.f32.mrb[0].mxu0
    %v1324 = vadd.f32 0.0, %v1323
    %v1325 = vpop.f32.mrb[0].mxu0
    %v1326 = vpop.f32.mrb[0].mxu0
    %v1327 = vpop.f32.mrb[0].mxu0
    %1328 = vdwg.mxu0
    %v1329 = vadd.f32 %v1253, %v1316
    %v1330 = vadd.f32 %v1254, %v1319
    %v1331 = vadd.f32 %v1255, %v1324
    %v1332 = vpack.c.bf16 %v707, %v706
    %v1333 = vpack.c.bf16 %v708, %v708
    %s1334 = scalar_lea.vmem %s3, 128
    %v1335 = vld [vmem:[%s1334] sm:$0xf]
    %v1336 = vld [vmem:[%s1334 + $0x4] sm:$0xf]
    %v1337 = vld [vmem:[%s1334 + $0x8] sm:$0xf]
    %v1338 = vld [vmem:[%s1334 + $0xc] sm:$0xf]
    %v1343 = vunpack.c.l.b16 %v1335
    %v1344 = vunpack.c.l.b16 %v1336
    %v1345 = vunpack.c.l.b16 %v1337
    %v1346 = vunpack.c.l.b16 %v1338
    %v1347 = vpack.c.b16 %v1344, %v1343
    %v1348 = vpack.c.b16 %v1346, %v1345
    %v1352 = vsel %vm755, %v1332, 0
    %v1355 = vsel %vm755, %v1333, 0
    %1357 = vmatprep.subr.bf16.mxu0 0
    %1358 = vmatpush1.bf16.msra.mxu0 %v1347
    %1359 = vmatprep.subr.bf16.mxu0 0
    %1360 = vmatpush1.bf16.msra.mxu0 %v1348
    %1361 = vmatprep.subr.bf16.mxu0 0
    %1362 = vmatpush1.bf16.msra.mxu0 0
    %1363 = vmatprep.subr.bf16.mxu0 0
    %1364 = vmatpush1.bf16.msra.mxu0 0
    %1365 = vmatprep.subr.bf16.mxu0 0
    %1366 = vmatpush1.bf16.msra.mxu0 0
    %1367 = vmatprep.subr.bf16.mxu0 0
    %1368 = vmatpush1.bf16.msra.mxu0 0
    %1369 = vmatprep.subr.bf16.mxu0 0
    %1370 = vmatpush1.bf16.msra.mxu0 0
    %1371 = vmatprep.subr.bf16.mxu0 0
    %1372 = vmatpush1.bf16.msra.mxu0 0
    %1373 = vmatprep.subr.bf16.mxu0 0
    %1374 = vmatpush1.bf16.msra.mxu0 0
    %1375 = vmatprep.subr.bf16.mxu0 0
    %1376 = vmatpush1.bf16.msra.mxu0 0
    %1377 = vmatprep.subr.bf16.mxu0 0
    %1378 = vmatpush1.bf16.msra.mxu0 0
    %1379 = vmatprep.subr.bf16.mxu0 0
    %1380 = vmatpush1.bf16.msra.mxu0 0
    %1381 = vmatprep.subr.bf16.mxu0 0
    %1382 = vmatpush1.bf16.msra.mxu0 0
    %1383 = vmatprep.subr.bf16.mxu0 0
    %1384 = vmatpush1.bf16.msra.mxu0 0
    %1385 = vmatprep.subr.bf16.mxu0 0
    %1386 = vmatpush1.bf16.msra.mxu0 0
    %1387 = vmatprep.subr.bf16.mxu0 0
    %1388 = vmatpush1.bf16.msra.mxu0 0
    %1389 = vmatprep.mubr.bf16.mxu0 0
    %1390 = vmatmul.mubr.bf16.gmra.mrb[0].mxu0 %v1352
    %v1391 = vpop.f32.mrb[0].mxu0
    %v1392 = vadd.f32 0.0, %v1391
    %v1393 = vpop.f32.mrb[0].mxu0
    %v1394 = vpop.f32.mrb[0].mxu0
    %v1395 = vadd.f32 0.0, %v1394
    %v1396 = vpop.f32.mrb[0].mxu0
    %1397 = vmatprep.mubr.bf16.mxu0 0
    %1398 = vmatmul.mubr.bf16.gmra.mrb[0].mxu0 %v1355
    %v1399 = vpop.f32.mrb[0].mxu0
    %v1400 = vadd.f32 0.0, %v1399
    %v1401 = vpop.f32.mrb[0].mxu0
    %v1402 = vpop.f32.mrb[0].mxu0
    %v1403 = vpop.f32.mrb[0].mxu0
    %1404 = vdwg.mxu0
    %v1405 = vadd.f32 %v1329, %v1392
    %v1406 = vadd.f32 %v1330, %v1395
    %v1407 = vadd.f32 %v1331, %v1400
    %v1408 = vpack.c.bf16 %v710, %v709
    %v1409 = vpack.c.bf16 %v711, %v711
    %s1410 = scalar_lea.vmem %s3, 144
    %v1411 = vld [vmem:[%s1410] sm:$0xf]
    %v1412 = vld [vmem:[%s1410 + $0x4] sm:$0xf]
    %v1413 = vld [vmem:[%s1410 + $0x8] sm:$0xf]
    %v1414 = vld [vmem:[%s1410 + $0xc] sm:$0xf]
    %v1419 = vunpack.c.l.b16 %v1411
    %v1420 = vunpack.c.l.b16 %v1412
    %v1421 = vunpack.c.l.b16 %v1413
    %v1422 = vunpack.c.l.b16 %v1414
    %v1423 = vpack.c.b16 %v1420, %v1419
    %v1424 = vpack.c.b16 %v1422, %v1421
    %v1428 = vsel %vm755, %v1408, 0
    %v1431 = vsel %vm755, %v1409, 0
    %1433 = vmatprep.subr.bf16.mxu0 0
    %1434 = vmatpush1.bf16.msra.mxu0 %v1423
    %1435 = vmatprep.subr.bf16.mxu0 0
    %1436 = vmatpush1.bf16.msra.mxu0 %v1424
    %1437 = vmatprep.subr.bf16.mxu0 0
    %1438 = vmatpush1.bf16.msra.mxu0 0
    %1439 = vmatprep.subr.bf16.mxu0 0
    %1440 = vmatpush1.bf16.msra.mxu0 0
    %1441 = vmatprep.subr.bf16.mxu0 0
    %1442 = vmatpush1.bf16.msra.mxu0 0
    %1443 = vmatprep.subr.bf16.mxu0 0
    %1444 = vmatpush1.bf16.msra.mxu0 0
    %1445 = vmatprep.subr.bf16.mxu0 0
    %1446 = vmatpush1.bf16.msra.mxu0 0
    %1447 = vmatprep.subr.bf16.mxu0 0
    %1448 = vmatpush1.bf16.msra.mxu0 0
    %1449 = vmatprep.subr.bf16.mxu0 0
    %1450 = vmatpush1.bf16.msra.mxu0 0
    %1451 = vmatprep.subr.bf16.mxu0 0
    %1452 = vmatpush1.bf16.msra.mxu0 0
    %1453 = vmatprep.subr.bf16.mxu0 0
    %1454 = vmatpush1.bf16.msra.mxu0 0
    %1455 = vmatprep.subr.bf16.mxu0 0
    %1456 = vmatpush1.bf16.msra.mxu0 0
    %1457 = vmatprep.subr.bf16.mxu0 0
    %1458 = vmatpush1.bf16.msra.mxu0 0
    %1459 = vmatprep.subr.bf16.mxu0 0
    %1460 = vmatpush1.bf16.msra.mxu0 0
    %1461 = vmatprep.subr.bf16.mxu0 0
    %1462 = vmatpush1.bf16.msra.mxu0 0
    %1463 = vmatprep.subr.bf16.mxu0 0
    %1464 = vmatpush1.bf16.msra.mxu0 0
    %1465 = vmatprep.mubr.bf16.mxu0 0
    %1466 = vmatmul.mubr.bf16.gmra.mrb[0].mxu0 %v1428
    %v1467 = vpop.f32.mrb[0].mxu0
    %v1468 = vadd.f32 0.0, %v1467
    %v1469 = vpop.f32.mrb[0].mxu0
    %v1470 = vpop.f32.mrb[0].mxu0
    %v1471 = vadd.f32 0.0, %v1470
    %v1472 = vpop.f32.mrb[0].mxu0
    %1473 = vmatprep.mubr.bf16.mxu0 0
    %1474 = vmatmul.mubr.bf16.gmra.mrb[0].mxu0 %v1431
    %v1475 = vpop.f32.mrb[0].mxu0
    %v1476 = vadd.f32 0.0, %v1475
    %v1477 = vpop.f32.mrb[0].mxu0
    %v1478 = vpop.f32.mrb[0].mxu0
    %v1479 = vpop.f32.mrb[0].mxu0
    %1480 = vdwg.mxu0
    %v1481 = vadd.f32 %v1405, %v1468
    %v1482 = vadd.f32 %v1406, %v1471
    %v1483 = vadd.f32 %v1407, %v1476
    %v1484 = vpack.c.bf16 %v713, %v712
    %v1485 = vpack.c.bf16 %v714, %v714
    %s1486 = scalar_lea.vmem %s3, 160
    %v1487 = vld [vmem:[%s1486] sm:$0xf]
    %v1488 = vld [vmem:[%s1486 + $0x4] sm:$0xf]
    %v1489 = vld [vmem:[%s1486 + $0x8] sm:$0xf]
    %v1490 = vld [vmem:[%s1486 + $0xc] sm:$0xf]
    %v1495 = vunpack.c.l.b16 %v1487
    %v1496 = vunpack.c.l.b16 %v1488
    %v1497 = vunpack.c.l.b16 %v1489
    %v1498 = vunpack.c.l.b16 %v1490
    %v1499 = vpack.c.b16 %v1496, %v1495
    %v1500 = vpack.c.b16 %v1498, %v1497
    %v1504 = vsel %vm755, %v1484, 0
    %v1507 = vsel %vm755, %v1485, 0
    %1509 = vmatprep.subr.bf16.mxu0 0
    %1510 = vmatpush1.bf16.msra.mxu0 %v1499
    %1511 = vmatprep.subr.bf16.mxu0 0
    %1512 = vmatpush1.bf16.msra.mxu0 %v1500
    %1513 = vmatprep.subr.bf16.mxu0 0
    %1514 = vmatpush1.bf16.msra.mxu0 0
    %1515 = vmatprep.subr.bf16.mxu0 0
    %1516 = vmatpush1.bf16.msra.mxu0 0
    %1517 = vmatprep.subr.bf16.mxu0 0
    %1518 = vmatpush1.bf16.msra.mxu0 0
    %1519 = vmatprep.subr.bf16.mxu0 0
    %1520 = vmatpush1.bf16.msra.mxu0 0
    %1521 = vmatprep.subr.bf16.mxu0 0
    %1522 = vmatpush1.bf16.msra.mxu0 0
    %1523 = vmatprep.subr.bf16.mxu0 0
    %1524 = vmatpush1.bf16.msra.mxu0 0
    %1525 = vmatprep.subr.bf16.mxu0 0
    %1526 = vmatpush1.bf16.msra.mxu0 0
    %1527 = vmatprep.subr.bf16.mxu0 0
    %1528 = vmatpush1.bf16.msra.mxu0 0
    %1529 = vmatprep.subr.bf16.mxu0 0
    %1530 = vmatpush1.bf16.msra.mxu0 0
    %1531 = vmatprep.subr.bf16.mxu0 0
    %1532 = vmatpush1.bf16.msra.mxu0 0
    %1533 = vmatprep.subr.bf16.mxu0 0
    %1534 = vmatpush1.bf16.msra.mxu0 0
    %1535 = vmatprep.subr.bf16.mxu0 0
    %1536 = vmatpush1.bf16.msra.mxu0 0
    %1537 = vmatprep.subr.bf16.mxu0 0
    %1538 = vmatpush1.bf16.msra.mxu0 0
    %1539 = vmatprep.subr.bf16.mxu0 0
    %1540 = vmatpush1.bf16.msra.mxu0 0
    %1541 = vmatprep.mubr.bf16.mxu0 0
    %1542 = vmatmul.mubr.bf16.gmra.mrb[0].mxu0 %v1504
    %v1543 = vpop.f32.mrb[0].mxu0
    %v1544 = vadd.f32 0.0, %v1543
    %v1545 = vpop.f32.mrb[0].mxu0
    %v1546 = vpop.f32.mrb[0].mxu0
    %v1547 = vadd.f32 0.0, %v1546
    %v1548 = vpop.f32.mrb[0].mxu0
    %1549 = vmatprep.mubr.bf16.mxu0 0
    %1550 = vmatmul.mubr.bf16.gmra.mrb[0].mxu0 %v1507
    %v1551 = vpop.f32.mrb[0].mxu0
    %v1552 = vadd.f32 0.0, %v1551
    %v1553 = vpop.f32.mrb[0].mxu0
    %v1554 = vpop.f32.mrb[0].mxu0
    %v1555 = vpop.f32.mrb[0].mxu0
    %1556 = vdwg.mxu0
    %v1557 = vadd.f32 %v1481, %v1544
    %v1558 = vadd.f32 %v1482, %v1547
    %v1559 = vadd.f32 %v1483, %v1552
    %v1560 = vpack.c.bf16 %v716, %v715
    %v1561 = vpack.c.bf16 %v717, %v717
    %s1562 = scalar_lea.vmem %s3, 176
    %v1563 = vld [vmem:[%s1562] sm:$0xf]
    %v1564 = vld [vmem:[%s1562 + $0x4] sm:$0xf]
    %v1565 = vld [vmem:[%s1562 + $0x8] sm:$0xf]
    %v1566 = vld [vmem:[%s1562 + $0xc] sm:$0xf]
    %v1571 = vunpack.c.l.b16 %v1563
    %v1572 = vunpack.c.l.b16 %v1564
    %v1573 = vunpack.c.l.b16 %v1565
    %v1574 = vunpack.c.l.b16 %v1566
    %v1575 = vpack.c.b16 %v1572, %v1571
    %v1576 = vpack.c.b16 %v1574, %v1573
    %v1580 = vsel %vm755, %v1560, 0
    %v1583 = vsel %vm755, %v1561, 0
    %1585 = vmatprep.subr.bf16.mxu0 0
    %1586 = vmatpush1.bf16.msra.mxu0 %v1575
    %1587 = vmatprep.subr.bf16.mxu0 0
    %1588 = vmatpush1.bf16.msra.mxu0 %v1576
    %1589 = vmatprep.subr.bf16.mxu0 0
    %1590 = vmatpush1.bf16.msra.mxu0 0
    %1591 = vmatprep.subr.bf16.mxu0 0
    %1592 = vmatpush1.bf16.msra.mxu0 0
    %1593 = vmatprep.subr.bf16.mxu0 0
    %1594 = vmatpush1.bf16.msra.mxu0 0
    %1595 = vmatprep.subr.bf16.mxu0 0
    %1596 = vmatpush1.bf16.msra.mxu0 0
    %1597 = vmatprep.subr.bf16.mxu0 0
    %1598 = vmatpush1.bf16.msra.mxu0 0
    %1599 = vmatprep.subr.bf16.mxu0 0
    %1600 = vmatpush1.bf16.msra.mxu0 0
    %1601 = vmatprep.subr.bf16.mxu0 0
    %1602 = vmatpush1.bf16.msra.mxu0 0
    %1603 = vmatprep.subr.bf16.mxu0 0
    %1604 = vmatpush1.bf16.msra.mxu0 0
    %1605 = vmatprep.subr.bf16.mxu0 0
    %1606 = vmatpush1.bf16.msra.mxu0 0
    %1607 = vmatprep.subr.bf16.mxu0 0
    %1608 = vmatpush1.bf16.msra.mxu0 0
    %1609 = vmatprep.subr.bf16.mxu0 0
    %1610 = vmatpush1.bf16.msra.mxu0 0
    %1611 = vmatprep.subr.bf16.mxu0 0
    %1612 = vmatpush1.bf16.msra.mxu0 0
    %1613 = vmatprep.subr.bf16.mxu0 0
    %1614 = vmatpush1.bf16.msra.mxu0 0
    %1615 = vmatprep.subr.bf16.mxu0 0
    %1616 = vmatpush1.bf16.msra.mxu0 0
    %1617 = vmatprep.mubr.bf16.mxu0 0
    %1618 = vmatmul.mubr.bf16.gmra.mrb[0].mxu0 %v1580
    %v1619 = vpop.f32.mrb[0].mxu0
    %v1620 = vadd.f32 0.0, %v1619
    %v1621 = vpop.f32.mrb[0].mxu0
    %v1622 = vpop.f32.mrb[0].mxu0
    %v1623 = vadd.f32 0.0, %v1622
    %v1624 = vpop.f32.mrb[0].mxu0
    %1625 = vmatprep.mubr.bf16.mxu0 0
    %1626 = vmatmul.mubr.bf16.gmra.mrb[0].mxu0 %v1583
    %v1627 = vpop.f32.mrb[0].mxu0
    %v1628 = vadd.f32 0.0, %v1627
    %v1629 = vpop.f32.mrb[0].mxu0
    %v1630 = vpop.f32.mrb[0].mxu0
    %v1631 = vpop.f32.mrb[0].mxu0
    %1632 = vdwg.mxu0
    %v1633 = vadd.f32 %v1557, %v1620
    %v1634 = vadd.f32 %v1558, %v1623
    %v1635 = vadd.f32 %v1559, %v1628
    %v1636 = vpack.c.bf16 %v719, %v718
    %v1637 = vpack.c.bf16 %v720, %v720
    %s1638 = scalar_lea.vmem %s3, 192
    %v1639 = vld [vmem:[%s1638] sm:$0xf]
    %v1640 = vld [vmem:[%s1638 + $0x4] sm:$0xf]
    %v1641 = vld [vmem:[%s1638 + $0x8] sm:$0xf]
    %v1642 = vld [vmem:[%s1638 + $0xc] sm:$0xf]
    %v1647 = vunpack.c.l.b16 %v1639
    %v1648 = vunpack.c.l.b16 %v1640
    %v1649 = vunpack.c.l.b16 %v1641
    %v1650 = vunpack.c.l.b16 %v1642
    %v1651 = vpack.c.b16 %v1648, %v1647
    %v1652 = vpack.c.b16 %v1650, %v1649
    %v1656 = vsel %vm755, %v1636, 0
    %v1659 = vsel %vm755, %v1637, 0
    %1661 = vmatprep.subr.bf16.mxu0 0
    %1662 = vmatpush1.bf16.msra.mxu0 %v1651
    %1663 = vmatprep.subr.bf16.mxu0 0
    %1664 = vmatpush1.bf16.msra.mxu0 %v1652
    %1665 = vmatprep.subr.bf16.mxu0 0
    %1666 = vmatpush1.bf16.msra.mxu0 0
    %1667 = vmatprep.subr.bf16.mxu0 0
    %1668 = vmatpush1.bf16.msra.mxu0 0
    %1669 = vmatprep.subr.bf16.mxu0 0
    %1670 = vmatpush1.bf16.msra.mxu0 0
    %1671 = vmatprep.subr.bf16.mxu0 0
    %1672 = vmatpush1.bf16.msra.mxu0 0
    %1673 = vmatprep.subr.bf16.mxu0 0
    %1674 = vmatpush1.bf16.msra.mxu0 0
    %1675 = vmatprep.subr.bf16.mxu0 0
    %1676 = vmatpush1.bf16.msra.mxu0 0
    %1677 = vmatprep.subr.bf16.mxu0 0
    %1678 = vmatpush1.bf16.msra.mxu0 0
    %1679 = vmatprep.subr.bf16.mxu0 0
    %1680 = vmatpush1.bf16.msra.mxu0 0
    %1681 = vmatprep.subr.bf16.mxu0 0
    %1682 = vmatpush1.bf16.msra.mxu0 0
    %1683 = vmatprep.subr.bf16.mxu0 0
    %1684 = vmatpush1.bf16.msra.mxu0 0
    %1685 = vmatprep.subr.bf16.mxu0 0
    %1686 = vmatpush1.bf16.msra.mxu0 0
    %1687 = vmatprep.subr.bf16.mxu0 0
    %1688 = vmatpush1.bf16.msra.mxu0 0
    %1689 = vmatprep.subr.bf16.mxu0 0
    %1690 = vmatpush1.bf16.msra.mxu0 0
    %1691 = vmatprep.subr.bf16.mxu0 0
    %1692 = vmatpush1.bf16.msra.mxu0 0
    %1693 = vmatprep.mubr.bf16.mxu0 0
    %1694 = vmatmul.mubr.bf16.gmra.mrb[0].mxu0 %v1656
    %v1695 = vpop.f32.mrb[0].mxu0
    %v1696 = vadd.f32 0.0, %v1695
    %v1697 = vpop.f32.mrb[0].mxu0
    %v1698 = vpop.f32.mrb[0].mxu0
    %v1699 = vadd.f32 0.0, %v1698
    %v1700 = vpop.f32.mrb[0].mxu0
    %1701 = vmatprep.mubr.bf16.mxu0 0
    %1702 = vmatmul.mubr.bf16.gmra.mrb[0].mxu0 %v1659
    %v1703 = vpop.f32.mrb[0].mxu0
    %v1704 = vadd.f32 0.0, %v1703
    %v1705 = vpop.f32.mrb[0].mxu0
    %v1706 = vpop.f32.mrb[0].mxu0
    %v1707 = vpop.f32.mrb[0].mxu0
    %1708 = vdwg.mxu0
    %v1709 = vadd.f32 %v1633, %v1696
    %v1710 = vadd.f32 %v1634, %v1699
    %v1711 = vadd.f32 %v1635, %v1704
    %v1712 = vpack.c.bf16 %v722, %v721
    %v1713 = vpack.c.bf16 %v723, %v723
    %s1714 = scalar_lea.vmem %s3, 208
    %v1715 = vld [vmem:[%s1714] sm:$0xf]
    %v1716 = vld [vmem:[%s1714 + $0x4] sm:$0xf]
    %v1717 = vld [vmem:[%s1714 + $0x8] sm:$0xf]
    %v1718 = vld [vmem:[%s1714 + $0xc] sm:$0xf]
    %v1723 = vunpack.c.l.b16 %v1715
    %v1724 = vunpack.c.l.b16 %v1716
    %v1725 = vunpack.c.l.b16 %v1717
    %v1726 = vunpack.c.l.b16 %v1718
    %v1727 = vpack.c.b16 %v1724, %v1723
    %v1728 = vpack.c.b16 %v1726, %v1725
    %v1732 = vsel %vm755, %v1712, 0
    %v1735 = vsel %vm755, %v1713, 0
    %1737 = vmatprep.subr.bf16.mxu0 0
    %1738 = vmatpush1.bf16.msra.mxu0 %v1727
    %1739 = vmatprep.subr.bf16.mxu0 0
    %1740 = vmatpush1.bf16.msra.mxu0 %v1728
    %1741 = vmatprep.subr.bf16.mxu0 0
    %1742 = vmatpush1.bf16.msra.mxu0 0
    %1743 = vmatprep.subr.bf16.mxu0 0
    %1744 = vmatpush1.bf16.msra.mxu0 0
    %1745 = vmatprep.subr.bf16.mxu0 0
    %1746 = vmatpush1.bf16.msra.mxu0 0
    %1747 = vmatprep.subr.bf16.mxu0 0
    %1748 = vmatpush1.bf16.msra.mxu0 0
    %1749 = vmatprep.subr.bf16.mxu0 0
    %1750 = vmatpush1.bf16.msra.mxu0 0
    %1751 = vmatprep.subr.bf16.mxu0 0
    %1752 = vmatpush1.bf16.msra.mxu0 0
    %1753 = vmatprep.subr.bf16.mxu0 0
    %1754 = vmatpush1.bf16.msra.mxu0 0
    %1755 = vmatprep.subr.bf16.mxu0 0
    %1756 = vmatpush1.bf16.msra.mxu0 0
    %1757 = vmatprep.subr.bf16.mxu0 0
    %1758 = vmatpush1.bf16.msra.mxu0 0
    %1759 = vmatprep.subr.bf16.mxu0 0
    %1760 = vmatpush1.bf16.msra.mxu0 0
    %1761 = vmatprep.subr.bf16.mxu0 0
    %1762 = vmatpush1.bf16.msra.mxu0 0
    %1763 = vmatprep.subr.bf16.mxu0 0
    %1764 = vmatpush1.bf16.msra.mxu0 0
    %1765 = vmatprep.subr.bf16.mxu0 0
    %1766 = vmatpush1.bf16.msra.mxu0 0
    %1767 = vmatprep.subr.bf16.mxu0 0
    %1768 = vmatpush1.bf16.msra.mxu0 0
    %1769 = vmatprep.mubr.bf16.mxu0 0
    %1770 = vmatmul.mubr.bf16.gmra.mrb[0].mxu0 %v1732
    %v1771 = vpop.f32.mrb[0].mxu0
    %v1772 = vadd.f32 0.0, %v1771
    %v1773 = vpop.f32.mrb[0].mxu0
    %v1774 = vpop.f32.mrb[0].mxu0
    %v1775 = vadd.f32 0.0, %v1774
    %v1776 = vpop.f32.mrb[0].mxu0
    %1777 = vmatprep.mubr.bf16.mxu0 0
    %1778 = vmatmul.mubr.bf16.gmra.mrb[0].mxu0 %v1735
    %v1779 = vpop.f32.mrb[0].mxu0
    %v1780 = vadd.f32 0.0, %v1779
    %v1781 = vpop.f32.mrb[0].mxu0
    %v1782 = vpop.f32.mrb[0].mxu0
    %v1783 = vpop.f32.mrb[0].mxu0
    %1784 = vdwg.mxu0
    %v1785 = vadd.f32 %v1709, %v1772
    %v1786 = vadd.f32 %v1710, %v1775
    %v1787 = vadd.f32 %v1711, %v1780
    %v1788 = vpack.c.bf16 %v725, %v724
    %v1789 = vpack.c.bf16 %v726, %v726
    %s1790 = scalar_lea.vmem %s3, 224
    %v1791 = vld [vmem:[%s1790] sm:$0xf]
    %v1792 = vld [vmem:[%s1790 + $0x4] sm:$0xf]
    %v1793 = vld [vmem:[%s1790 + $0x8] sm:$0xf]
    %v1794 = vld [vmem:[%s1790 + $0xc] sm:$0xf]
    %v1799 = vunpack.c.l.b16 %v1791
    %v1800 = vunpack.c.l.b16 %v1792
    %v1801 = vunpack.c.l.b16 %v1793
    %v1802 = vunpack.c.l.b16 %v1794
    %v1803 = vpack.c.b16 %v1800, %v1799
    %v1804 = vpack.c.b16 %v1802, %v1801
    %v1808 = vsel %vm755, %v1788, 0
    %v1811 = vsel %vm755, %v1789, 0
    %1813 = vmatprep.subr.bf16.mxu0 0
    %1814 = vmatpush1.bf16.msra.mxu0 %v1803
    %1815 = vmatprep.subr.bf16.mxu0 0
    %1816 = vmatpush1.bf16.msra.mxu0 %v1804
    %1817 = vmatprep.subr.bf16.mxu0 0
    %1818 = vmatpush1.bf16.msra.mxu0 0
    %1819 = vmatprep.subr.bf16.mxu0 0
    %1820 = vmatpush1.bf16.msra.mxu0 0
    %1821 = vmatprep.subr.bf16.mxu0 0
    %1822 = vmatpush1.bf16.msra.mxu0 0
    %1823 = vmatprep.subr.bf16.mxu0 0
    %1824 = vmatpush1.bf16.msra.mxu0 0
    %1825 = vmatprep.subr.bf16.mxu0 0
    %1826 = vmatpush1.bf16.msra.mxu0 0
    %1827 = vmatprep.subr.bf16.mxu0 0
    %1828 = vmatpush1.bf16.msra.mxu0 0
    %1829 = vmatprep.subr.bf16.mxu0 0
    %1830 = vmatpush1.bf16.msra.mxu0 0
    %1831 = vmatprep.subr.bf16.mxu0 0
    %1832 = vmatpush1.bf16.msra.mxu0 0
    %1833 = vmatprep.subr.bf16.mxu0 0
    %1834 = vmatpush1.bf16.msra.mxu0 0
    %1835 = vmatprep.subr.bf16.mxu0 0
    %1836 = vmatpush1.bf16.msra.mxu0 0
    %1837 = vmatprep.subr.bf16.mxu0 0
    %1838 = vmatpush1.bf16.msra.mxu0 0
    %1839 = vmatprep.subr.bf16.mxu0 0
    %1840 = vmatpush1.bf16.msra.mxu0 0
    %1841 = vmatprep.subr.bf16.mxu0 0
    %1842 = vmatpush1.bf16.msra.mxu0 0
    %1843 = vmatprep.subr.bf16.mxu0 0
    %1844 = vmatpush1.bf16.msra.mxu0 0
    %1845 = vmatprep.mubr.bf16.mxu0 0
    %1846 = vmatmul.mubr.bf16.gmra.mrb[0].mxu0 %v1808
    %v1847 = vpop.f32.mrb[0].mxu0
    %v1848 = vadd.f32 0.0, %v1847
    %v1849 = vpop.f32.mrb[0].mxu0
    %v1850 = vpop.f32.mrb[0].mxu0
    %v1851 = vadd.f32 0.0, %v1850
    %v1852 = vpop.f32.mrb[0].mxu0
    %1853 = vmatprep.mubr.bf16.mxu0 0
    %1854 = vmatmul.mubr.bf16.gmra.mrb[0].mxu0 %v1811
    %v1855 = vpop.f32.mrb[0].mxu0
    %v1856 = vadd.f32 0.0, %v1855
    %v1857 = vpop.f32.mrb[0].mxu0
    %v1858 = vpop.f32.mrb[0].mxu0
    %v1859 = vpop.f32.mrb[0].mxu0
    %1860 = vdwg.mxu0
    %v1861 = vadd.f32 %v1785, %v1848
    %v1862 = vadd.f32 %v1786, %v1851
    %v1863 = vadd.f32 %v1787, %v1856
    %v1864 = vpack.c.bf16 %v728, %v727
    %v1865 = vpack.c.bf16 %v729, %v729
    %s1866 = scalar_lea.vmem %s3, 240
    %v1867 = vld [vmem:[%s1866] sm:$0xf]
    %v1868 = vld [vmem:[%s1866 + $0x4] sm:$0xf]
    %v1869 = vld [vmem:[%s1866 + $0x8] sm:$0xf]
    %v1870 = vld [vmem:[%s1866 + $0xc] sm:$0xf]
    %v1875 = vunpack.c.l.b16 %v1867
    %v1876 = vunpack.c.l.b16 %v1868
    %v1877 = vunpack.c.l.b16 %v1869
    %v1878 = vunpack.c.l.b16 %v1870
    %v1879 = vpack.c.b16 %v1876, %v1875
    %v1880 = vpack.c.b16 %v1878, %v1877
    %v1884 = vsel %vm755, %v1864, 0
    %v1887 = vsel %vm755, %v1865, 0
    %1889 = vmatprep.subr.bf16.mxu0 0
    %1890 = vmatpush1.bf16.msra.mxu0 %v1879
    %1891 = vmatprep.subr.bf16.mxu0 0
    %1892 = vmatpush1.bf16.msra.mxu0 %v1880
    %1893 = vmatprep.subr.bf16.mxu0 0
    %1894 = vmatpush1.bf16.msra.mxu0 0
    %1895 = vmatprep.subr.bf16.mxu0 0
    %1896 = vmatpush1.bf16.msra.mxu0 0
    %1897 = vmatprep.subr.bf16.mxu0 0
    %1898 = vmatpush1.bf16.msra.mxu0 0
    %1899 = vmatprep.subr.bf16.mxu0 0
    %1900 = vmatpush1.bf16.msra.mxu0 0
    %1901 = vmatprep.subr.bf16.mxu0 0
    %1902 = vmatpush1.bf16.msra.mxu0 0
    %1903 = vmatprep.subr.bf16.mxu0 0
    %1904 = vmatpush1.bf16.msra.mxu0 0
    %1905 = vmatprep.subr.bf16.mxu0 0
    %1906 = vmatpush1.bf16.msra.mxu0 0
    %1907 = vmatprep.subr.bf16.mxu0 0
    %1908 = vmatpush1.bf16.msra.mxu0 0
    %1909 = vmatprep.subr.bf16.mxu0 0
    %1910 = vmatpush1.bf16.msra.mxu0 0
    %1911 = vmatprep.subr.bf16.mxu0 0
    %1912 = vmatpush1.bf16.msra.mxu0 0
    %1913 = vmatprep.subr.bf16.mxu0 0
    %1914 = vmatpush1.bf16.msra.mxu0 0
    %1915 = vmatprep.subr.bf16.mxu0 0
    %1916 = vmatpush1.bf16.msra.mxu0 0
    %1917 = vmatprep.subr.bf16.mxu0 0
    %1918 = vmatpush1.bf16.msra.mxu0 0
    %1919 = vmatprep.subr.bf16.mxu0 0
    %1920 = vmatpush1.bf16.msra.mxu0 0
    %1921 = vmatprep.mubr.bf16.mxu0 0
    %1922 = vmatmul.mubr.bf16.gmra.mrb[0].mxu0 %v1884
    %v1923 = vpop.f32.mrb[0].mxu0
    %v1924 = vadd.f32 0.0, %v1923
    %v1925 = vpop.f32.mrb[0].mxu0
    %v1926 = vpop.f32.mrb[0].mxu0
    %v1927 = vadd.f32 0.0, %v1926
    %v1928 = vpop.f32.mrb[0].mxu0
    %1929 = vmatprep.mubr.bf16.mxu0 0
    %1930 = vmatmul.mubr.bf16.gmra.mrb[0].mxu0 %v1887
    %v1931 = vpop.f32.mrb[0].mxu0
    %v1932 = vadd.f32 0.0, %v1931
    %v1933 = vpop.f32.mrb[0].mxu0
    %v1934 = vpop.f32.mrb[0].mxu0
    %v1935 = vpop.f32.mrb[0].mxu0
    %1936 = vdwg.mxu0
    %v1937 = vadd.f32 %v1861, %v1924
    %v1938 = vadd.f32 %v1862, %v1927
    %v1939 = vadd.f32 %v1863, %v1932
    %v1940 = vld [vmem:[%s4] sm:$0x1]
    %v1942 = vlaneseq
    %v1943 = vshrl.u32 %v1942, 7
    %v1944 = vsub.s32 0, %v1943
    %v1945 = vrot.slane %v1940, %v1944
    %v1947 = vadd.f32 %v1937, %v1945
    %v1948 = vadd.f32 %v1938, %v1945
    %v1949 = vadd.f32 %v1939, %v1945
    %v1950 = vmax.f32 %v1947, 0.0
    %v1951 = vmax.f32 %v1948, 0.0
    %v1952 = vmax.f32 %v1949, 0.0
    %v1953 = vpack.c.bf16 %v1950, %v1950
    %v1954 = vld [vmem:[%s5] sm:$0xf]
    %v1955 = vld [vmem:[%s5 + $0x4] sm:$0xf]
    %v1956 = vld [vmem:[%s5 + $0x8] sm:$0xf]
    %v1957 = vld [vmem:[%s5 + $0xc] sm:$0xf]
    %v1958 = vld [vmem:[%s5 + $0x10] sm:$0xf]
    %v1959 = vld [vmem:[%s5 + $0x14] sm:$0xf]
    %v1960 = vld [vmem:[%s5 + $0x18] sm:$0xf]
    %v1961 = vld [vmem:[%s5 + $0x1c] sm:$0xf]
    %s1962 = scalar_lea.vmem %s5, 32
    %v1963 = vld [vmem:[%s1962] sm:$0xf]
    %v1964 = vld [vmem:[%s1962 + $0x4] sm:$0xf]
    %v1965 = vld [vmem:[%s1962 + $0x8] sm:$0xf]
    %v1966 = vld [vmem:[%s1962 + $0xc] sm:$0xf]
    %v1967 = vld [vmem:[%s1962 + $0x10] sm:$0xf]
    %v1968 = vld [vmem:[%s1962 + $0x14] sm:$0xf]
    %v1969 = vld [vmem:[%s1962 + $0x18] sm:$0xf]
    %v1970 = vld [vmem:[%s1962 + $0x1c] sm:$0xf]
    %v1972 = vrot.slane %v1953, 1
    %v1981 = vunpack.c.l.b16 %v1963
    %v1982 = vunpack.c.l.b16 %v1964
    %v1983 = vunpack.c.l.b16 %v1965
    %v1984 = vunpack.c.l.b16 %v1966
    %v1985 = vunpack.c.l.b16 %v1967
    %v1986 = vunpack.c.l.b16 %v1968
    %v1987 = vunpack.c.l.b16 %v1969
    %v1988 = vunpack.c.l.b16 %v1970
    %v1989 = vpack.c.b16 %v1982, %v1981
    %v1990 = vpack.c.b16 %v1984, %v1983
    %v1991 = vpack.c.b16 %v1986, %v1985
    %v1992 = vpack.c.b16 %v1988, %v1987
    %vm1997 = vcmask 523264
    %v1999 = vsel %vm1997, %v1972, 0
    %2001 = vmatprep.subr.bf16.mxu0 0
    %2002 = vmatpush1.bf16.msra.mxu0 %v1989
    %2003 = vmatprep.subr.bf16.mxu0 0
    %2004 = vmatpush1.bf16.msra.mxu0 %v1990
    %2005 = vmatprep.subr.bf16.mxu0 0
    %2006 = vmatpush1.bf16.msra.mxu0 %v1991
    %2007 = vmatprep.subr.bf16.mxu0 0
    %2008 = vmatpush1.bf16.msra.mxu0 %v1992
    %2009 = vmatprep.subr.bf16.mxu0 0
    %2010 = vmatpush1.bf16.msra.mxu0 0
    %2011 = vmatprep.subr.bf16.mxu0 0
    %2012 = vmatpush1.bf16.msra.mxu0 0
    %2013 = vmatprep.subr.bf16.mxu0 0
    %2014 = vmatpush1.bf16.msra.mxu0 0
    %2015 = vmatprep.subr.bf16.mxu0 0
    %2016 = vmatpush1.bf16.msra.mxu0 0
    %2017 = vmatprep.subr.bf16.mxu0 0
    %2018 = vmatpush1.bf16.msra.mxu0 0
    %2019 = vmatprep.subr.bf16.mxu0 0
    %2020 = vmatpush1.bf16.msra.mxu0 0
    %2021 = vmatprep.subr.bf16.mxu0 0
    %2022 = vmatpush1.bf16.msra.mxu0 0
    %2023 = vmatprep.subr.bf16.mxu0 0
    %2024 = vmatpush1.bf16.msra.mxu0 0
    %2025 = vmatprep.subr.bf16.mxu0 0
    %2026 = vmatpush1.bf16.msra.mxu0 0
    %2027 = vmatprep.subr.bf16.mxu0 0
    %2028 = vmatpush1.bf16.msra.mxu0 0
    %2029 = vmatprep.subr.bf16.mxu0 0
    %2030 = vmatpush1.bf16.msra.mxu0 0
    %2031 = vmatprep.subr.bf16.mxu0 0
    %2032 = vmatpush1.bf16.msra.mxu0 0
    %2033 = vmatprep.mubr.bf16.mxu0 0
    %2034 = vmatmul.mubr.bf16.gmra.mrb[0].mxu0 %v1999
    %v2035 = vpop.f32.mrb[0].mxu0
    %v2036 = vadd.f32 0.0, %v2035
    %v2037 = vpop.f32.mrb[0].mxu0
    %v2038 = vpop.f32.mrb[0].mxu0
    %v2039 = vpop.f32.mrb[0].mxu0
    %2040 = vdwg.mxu0
    %v2049 = vunpack.c.l.b16 %v1954
    %v2050 = vunpack.c.l.b16 %v1955
    %v2051 = vunpack.c.l.b16 %v1956
    %v2052 = vunpack.c.l.b16 %v1957
    %v2053 = vunpack.c.l.b16 %v1958
    %v2054 = vunpack.c.l.b16 %v1959
    %v2055 = vunpack.c.l.b16 %v1960
    %v2056 = vunpack.c.l.b16 %v1961
    %v2057 = vpack.c.b16 %v2050, %v2049
    %v2058 = vpack.c.b16 %v2052, %v2051
    %v2059 = vpack.c.b16 %v2054, %v2053
    %v2060 = vpack.c.b16 %v2056, %v2055
    %v2066 = vsel %vm1997, %v1953, 0
    %2068 = vmatprep.subr.bf16.mxu0 0
    %2069 = vmatpush1.bf16.msra.mxu0 %v2057
    %2070 = vmatprep.subr.bf16.mxu0 0
    %2071 = vmatpush1.bf16.msra.mxu0 %v2058
    %2072 = vmatprep.subr.bf16.mxu0 0
    %2073 = vmatpush1.bf16.msra.mxu0 %v2059
    %2074 = vmatprep.subr.bf16.mxu0 0
    %2075 = vmatpush1.bf16.msra.mxu0 %v2060
    %2076 = vmatprep.subr.bf16.mxu0 0
    %2077 = vmatpush1.bf16.msra.mxu0 0
    %2078 = vmatprep.subr.bf16.mxu0 0
    %2079 = vmatpush1.bf16.msra.mxu0 0
    %2080 = vmatprep.subr.bf16.mxu0 0
    %2081 = vmatpush1.bf16.msra.mxu0 0
    %2082 = vmatprep.subr.bf16.mxu0 0
    %2083 = vmatpush1.bf16.msra.mxu0 0
    %2084 = vmatprep.subr.bf16.mxu0 0
    %2085 = vmatpush1.bf16.msra.mxu0 0
    %2086 = vmatprep.subr.bf16.mxu0 0
    %2087 = vmatpush1.bf16.msra.mxu0 0
    %2088 = vmatprep.subr.bf16.mxu0 0
    %2089 = vmatpush1.bf16.msra.mxu0 0
    %2090 = vmatprep.subr.bf16.mxu0 0
    %2091 = vmatpush1.bf16.msra.mxu0 0
    %2092 = vmatprep.subr.bf16.mxu0 0
    %2093 = vmatpush1.bf16.msra.mxu0 0
    %2094 = vmatprep.subr.bf16.mxu0 0
    %2095 = vmatpush1.bf16.msra.mxu0 0
    %2096 = vmatprep.subr.bf16.mxu0 0
    %2097 = vmatpush1.bf16.msra.mxu0 0
    %2098 = vmatprep.subr.bf16.mxu0 0
    %2099 = vmatpush1.bf16.msra.mxu0 0
    %2100 = vmatprep.mubr.bf16.mxu0 0
    %2101 = vmatmul.mubr.bf16.gmra.mrb[0].mxu0 %v2066
    %v2102 = vpop.f32.mrb[0].mxu0
    %v2103 = vadd.f32 %v2036, %v2102
    %v2104 = vpop.f32.mrb[0].mxu0
    %v2105 = vpop.f32.mrb[0].mxu0
    %v2106 = vpop.f32.mrb[0].mxu0
    %2107 = vdwg.mxu0
    %s2108 = scalar_lea.vmem %s5, 64
    %v2109 = vld [vmem:[%s2108] sm:$0xf]
    %v2110 = vld [vmem:[%s2108 + $0x4] sm:$0xf]
    %v2111 = vld [vmem:[%s2108 + $0x8] sm:$0xf]
    %v2112 = vld [vmem:[%s2108 + $0xc] sm:$0xf]
    %v2113 = vld [vmem:[%s2108 + $0x10] sm:$0xf]
    %v2114 = vld [vmem:[%s2108 + $0x14] sm:$0xf]
    %v2115 = vld [vmem:[%s2108 + $0x18] sm:$0xf]
    %v2116 = vld [vmem:[%s2108 + $0x1c] sm:$0xf]
    %v2117 = vrot.slane %v1953, 2
    %v2126 = vunpack.c.l.b16 %v2109
    %v2127 = vunpack.c.l.b16 %v2110
    %v2128 = vunpack.c.l.b16 %v2111
    %v2129 = vunpack.c.l.b16 %v2112
    %v2130 = vunpack.c.l.b16 %v2113
    %v2131 = vunpack.c.l.b16 %v2114
    %v2132 = vunpack.c.l.b16 %v2115
    %v2133 = vunpack.c.l.b16 %v2116
    %v2134 = vpack.c.b16 %v2127, %v2126
    %v2135 = vpack.c.b16 %v2129, %v2128
    %v2136 = vpack.c.b16 %v2131, %v2130
    %v2137 = vpack.c.b16 %v2133, %v2132
    %v2143 = vsel %vm1997, %v2117, 0
    %2145 = vmatprep.subr.bf16.mxu0 0
    %2146 = vmatpush1.bf16.msra.mxu0 %v2134
    %2147 = vmatprep.subr.bf16.mxu0 0
    %2148 = vmatpush1.bf16.msra.mxu0 %v2135
    %2149 = vmatprep.subr.bf16.mxu0 0
    %2150 = vmatpush1.bf16.msra.mxu0 %v2136
    %2151 = vmatprep.subr.bf16.mxu0 0
    %2152 = vmatpush1.bf16.msra.mxu0 %v2137
    %2153 = vmatprep.subr.bf16.mxu0 0
    %2154 = vmatpush1.bf16.msra.mxu0 0
    %2155 = vmatprep.subr.bf16.mxu0 0
    %2156 = vmatpush1.bf16.msra.mxu0 0
    %2157 = vmatprep.subr.bf16.mxu0 0
    %2158 = vmatpush1.bf16.msra.mxu0 0
    %2159 = vmatprep.subr.bf16.mxu0 0
    %2160 = vmatpush1.bf16.msra.mxu0 0
    %2161 = vmatprep.subr.bf16.mxu0 0
    %2162 = vmatpush1.bf16.msra.mxu0 0
    %2163 = vmatprep.subr.bf16.mxu0 0
    %2164 = vmatpush1.bf16.msra.mxu0 0
    %2165 = vmatprep.subr.bf16.mxu0 0
    %2166 = vmatpush1.bf16.msra.mxu0 0
    %2167 = vmatprep.subr.bf16.mxu0 0
    %2168 = vmatpush1.bf16.msra.mxu0 0
    %2169 = vmatprep.subr.bf16.mxu0 0
    %2170 = vmatpush1.bf16.msra.mxu0 0
    %2171 = vmatprep.subr.bf16.mxu0 0
    %2172 = vmatpush1.bf16.msra.mxu0 0
    %2173 = vmatprep.subr.bf16.mxu0 0
    %2174 = vmatpush1.bf16.msra.mxu0 0
    %2175 = vmatprep.subr.bf16.mxu0 0
    %2176 = vmatpush1.bf16.msra.mxu0 0
    %2177 = vmatprep.mubr.bf16.mxu0 0
    %2178 = vmatmul.mubr.bf16.gmra.mrb[0].mxu0 %v2143
    %v2179 = vpop.f32.mrb[0].mxu0
    %v2180 = vadd.f32 0.0, %v2179
    %v2181 = vpop.f32.mrb[0].mxu0
    %v2182 = vpop.f32.mrb[0].mxu0
    %v2183 = vpop.f32.mrb[0].mxu0
    %2184 = vdwg.mxu0
    %v2185 = vadd.f32 %v2103, %v2180
    %s2186 = scalar_lea.vmem %s5, 96
    %v2187 = vld [vmem:[%s2186] sm:$0xf]
    %v2188 = vld [vmem:[%s2186 + $0x4] sm:$0xf]
    %v2189 = vld [vmem:[%s2186 + $0x8] sm:$0xf]
    %v2190 = vld [vmem:[%s2186 + $0xc] sm:$0xf]
    %v2191 = vld [vmem:[%s2186 + $0x10] sm:$0xf]
    %v2192 = vld [vmem:[%s2186 + $0x14] sm:$0xf]
    %v2193 = vld [vmem:[%s2186 + $0x18] sm:$0xf]
    %v2194 = vld [vmem:[%s2186 + $0x1c] sm:$0xf]
    %v2195 = vrot.slane %v1953, 3
    %v2204 = vunpack.c.l.b16 %v2187
    %v2205 = vunpack.c.l.b16 %v2188
    %v2206 = vunpack.c.l.b16 %v2189
    %v2207 = vunpack.c.l.b16 %v2190
    %v2208 = vunpack.c.l.b16 %v2191
    %v2209 = vunpack.c.l.b16 %v2192
    %v2210 = vunpack.c.l.b16 %v2193
    %v2211 = vunpack.c.l.b16 %v2194
    %v2212 = vpack.c.b16 %v2205, %v2204
    %v2213 = vpack.c.b16 %v2207, %v2206
    %v2214 = vpack.c.b16 %v2209, %v2208
    %v2215 = vpack.c.b16 %v2211, %v2210
    %v2221 = vsel %vm1997, %v2195, 0
    %2223 = vmatprep.subr.bf16.mxu0 0
    %2224 = vmatpush1.bf16.msra.mxu0 %v2212
    %2225 = vmatprep.subr.bf16.mxu0 0
    %2226 = vmatpush1.bf16.msra.mxu0 %v2213
    %2227 = vmatprep.subr.bf16.mxu0 0
    %2228 = vmatpush1.bf16.msra.mxu0 %v2214
    %2229 = vmatprep.subr.bf16.mxu0 0
    %2230 = vmatpush1.bf16.msra.mxu0 %v2215
    %2231 = vmatprep.subr.bf16.mxu0 0
    %2232 = vmatpush1.bf16.msra.mxu0 0
    %2233 = vmatprep.subr.bf16.mxu0 0
    %2234 = vmatpush1.bf16.msra.mxu0 0
    %2235 = vmatprep.subr.bf16.mxu0 0
    %2236 = vmatpush1.bf16.msra.mxu0 0
    %2237 = vmatprep.subr.bf16.mxu0 0
    %2238 = vmatpush1.bf16.msra.mxu0 0
    %2239 = vmatprep.subr.bf16.mxu0 0
    %2240 = vmatpush1.bf16.msra.mxu0 0
    %2241 = vmatprep.subr.bf16.mxu0 0
    %2242 = vmatpush1.bf16.msra.mxu0 0
    %2243 = vmatprep.subr.bf16.mxu0 0
    %2244 = vmatpush1.bf16.msra.mxu0 0
    %2245 = vmatprep.subr.bf16.mxu0 0
    %2246 = vmatpush1.bf16.msra.mxu0 0
    %2247 = vmatprep.subr.bf16.mxu0 0
    %2248 = vmatpush1.bf16.msra.mxu0 0
    %2249 = vmatprep.subr.bf16.mxu0 0
    %2250 = vmatpush1.bf16.msra.mxu0 0
    %2251 = vmatprep.subr.bf16.mxu0 0
    %2252 = vmatpush1.bf16.msra.mxu0 0
    %2253 = vmatprep.subr.bf16.mxu0 0
    %2254 = vmatpush1.bf16.msra.mxu0 0
    %2255 = vmatprep.mubr.bf16.mxu0 0
    %2256 = vmatmul.mubr.bf16.gmra.mrb[0].mxu0 %v2221
    %v2257 = vpop.f32.mrb[0].mxu0
    %v2258 = vadd.f32 0.0, %v2257
    %v2259 = vpop.f32.mrb[0].mxu0
    %v2260 = vpop.f32.mrb[0].mxu0
    %v2261 = vpop.f32.mrb[0].mxu0
    %2262 = vdwg.mxu0
    %v2263 = vadd.f32 %v2185, %v2258
    %v2264 = vpack.c.bf16 %v1951, %v1951
    %s2265 = scalar_lea.vmem %s5, 128
    %v2266 = vld [vmem:[%s2265] sm:$0xf]
    %v2267 = vld [vmem:[%s2265 + $0x4] sm:$0xf]
    %v2268 = vld [vmem:[%s2265 + $0x8] sm:$0xf]
    %v2269 = vld [vmem:[%s2265 + $0xc] sm:$0xf]
    %v2270 = vld [vmem:[%s2265 + $0x10] sm:$0xf]
    %v2271 = vld [vmem:[%s2265 + $0x14] sm:$0xf]
    %v2272 = vld [vmem:[%s2265 + $0x18] sm:$0xf]
    %v2273 = vld [vmem:[%s2265 + $0x1c] sm:$0xf]
    %v2282 = vunpack.c.l.b16 %v2266
    %v2283 = vunpack.c.l.b16 %v2267
    %v2284 = vunpack.c.l.b16 %v2268
    %v2285 = vunpack.c.l.b16 %v2269
    %v2286 = vunpack.c.l.b16 %v2270
    %v2287 = vunpack.c.l.b16 %v2271
    %v2288 = vunpack.c.l.b16 %v2272
    %v2289 = vunpack.c.l.b16 %v2273
    %v2290 = vpack.c.b16 %v2283, %v2282
    %v2291 = vpack.c.b16 %v2285, %v2284
    %v2292 = vpack.c.b16 %v2287, %v2286
    %v2293 = vpack.c.b16 %v2289, %v2288
    %v2299 = vsel %vm1997, %v2264, 0
    %2301 = vmatprep.subr.bf16.mxu0 0
    %2302 = vmatpush1.bf16.msra.mxu0 %v2290
    %2303 = vmatprep.subr.bf16.mxu0 0
    %2304 = vmatpush1.bf16.msra.mxu0 %v2291
    %2305 = vmatprep.subr.bf16.mxu0 0
    %2306 = vmatpush1.bf16.msra.mxu0 %v2292
    %2307 = vmatprep.subr.bf16.mxu0 0
    %2308 = vmatpush1.bf16.msra.mxu0 %v2293
    %2309 = vmatprep.subr.bf16.mxu0 0
    %2310 = vmatpush1.bf16.msra.mxu0 0
    %2311 = vmatprep.subr.bf16.mxu0 0
    %2312 = vmatpush1.bf16.msra.mxu0 0
    %2313 = vmatprep.subr.bf16.mxu0 0
    %2314 = vmatpush1.bf16.msra.mxu0 0
    %2315 = vmatprep.subr.bf16.mxu0 0
    %2316 = vmatpush1.bf16.msra.mxu0 0
    %2317 = vmatprep.subr.bf16.mxu0 0
    %2318 = vmatpush1.bf16.msra.mxu0 0
    %2319 = vmatprep.subr.bf16.mxu0 0
    %2320 = vmatpush1.bf16.msra.mxu0 0
    %2321 = vmatprep.subr.bf16.mxu0 0
    %2322 = vmatpush1.bf16.msra.mxu0 0
    %2323 = vmatprep.subr.bf16.mxu0 0
    %2324 = vmatpush1.bf16.msra.mxu0 0
    %2325 = vmatprep.subr.bf16.mxu0 0
    %2326 = vmatpush1.bf16.msra.mxu0 0
    %2327 = vmatprep.subr.bf16.mxu0 0
    %2328 = vmatpush1.bf16.msra.mxu0 0
    %2329 = vmatprep.subr.bf16.mxu0 0
    %2330 = vmatpush1.bf16.msra.mxu0 0
    %2331 = vmatprep.subr.bf16.mxu0 0
    %2332 = vmatpush1.bf16.msra.mxu0 0
    %2333 = vmatprep.mubr.bf16.mxu0 0
    %2334 = vmatmul.mubr.bf16.gmra.mrb[0].mxu0 %v2299
    %v2335 = vpop.f32.mrb[0].mxu0
    %v2336 = vadd.f32 0.0, %v2335
    %v2337 = vpop.f32.mrb[0].mxu0
    %v2338 = vpop.f32.mrb[0].mxu0
    %v2339 = vpop.f32.mrb[0].mxu0
    %2340 = vdwg.mxu0
    %v2341 = vadd.f32 %v2263, %v2336
    %s2342 = scalar_lea.vmem %s5, 160
    %v2343 = vld [vmem:[%s2342] sm:$0xf]
    %v2344 = vld [vmem:[%s2342 + $0x4] sm:$0xf]
    %v2345 = vld [vmem:[%s2342 + $0x8] sm:$0xf]
    %v2346 = vld [vmem:[%s2342 + $0xc] sm:$0xf]
    %v2347 = vld [vmem:[%s2342 + $0x10] sm:$0xf]
    %v2348 = vld [vmem:[%s2342 + $0x14] sm:$0xf]
    %v2349 = vld [vmem:[%s2342 + $0x18] sm:$0xf]
    %v2350 = vld [vmem:[%s2342 + $0x1c] sm:$0xf]
    %v2352 = vrot.slane %v2264, 1
    %v2361 = vunpack.c.l.b16 %v2343
    %v2362 = vunpack.c.l.b16 %v2344
    %v2363 = vunpack.c.l.b16 %v2345
    %v2364 = vunpack.c.l.b16 %v2346
    %v2365 = vunpack.c.l.b16 %v2347
    %v2366 = vunpack.c.l.b16 %v2348
    %v2367 = vunpack.c.l.b16 %v2349
    %v2368 = vunpack.c.l.b16 %v2350
    %v2369 = vpack.c.b16 %v2362, %v2361
    %v2370 = vpack.c.b16 %v2364, %v2363
    %v2371 = vpack.c.b16 %v2366, %v2365
    %v2372 = vpack.c.b16 %v2368, %v2367
    %v2378 = vsel %vm1997, %v2352, 0
    %2380 = vmatprep.subr.bf16.mxu0 0
    %2381 = vmatpush1.bf16.msra.mxu0 %v2369
    %2382 = vmatprep.subr.bf16.mxu0 0
    %2383 = vmatpush1.bf16.msra.mxu0 %v2370
    %2384 = vmatprep.subr.bf16.mxu0 0
    %2385 = vmatpush1.bf16.msra.mxu0 %v2371
    %2386 = vmatprep.subr.bf16.mxu0 0
    %2387 = vmatpush1.bf16.msra.mxu0 %v2372
    %2388 = vmatprep.subr.bf16.mxu0 0
    %2389 = vmatpush1.bf16.msra.mxu0 0
    %2390 = vmatprep.subr.bf16.mxu0 0
    %2391 = vmatpush1.bf16.msra.mxu0 0
    %2392 = vmatprep.subr.bf16.mxu0 0
    %2393 = vmatpush1.bf16.msra.mxu0 0
    %2394 = vmatprep.subr.bf16.mxu0 0
    %2395 = vmatpush1.bf16.msra.mxu0 0
    %2396 = vmatprep.subr.bf16.mxu0 0
    %2397 = vmatpush1.bf16.msra.mxu0 0
    %2398 = vmatprep.subr.bf16.mxu0 0
    %2399 = vmatpush1.bf16.msra.mxu0 0
    %2400 = vmatprep.subr.bf16.mxu0 0
    %2401 = vmatpush1.bf16.msra.mxu0 0
    %2402 = vmatprep.subr.bf16.mxu0 0
    %2403 = vmatpush1.bf16.msra.mxu0 0
    %2404 = vmatprep.subr.bf16.mxu0 0
    %2405 = vmatpush1.bf16.msra.mxu0 0
    %2406 = vmatprep.subr.bf16.mxu0 0
    %2407 = vmatpush1.bf16.msra.mxu0 0
    %2408 = vmatprep.subr.bf16.mxu0 0
    %2409 = vmatpush1.bf16.msra.mxu0 0
    %2410 = vmatprep.subr.bf16.mxu0 0
    %2411 = vmatpush1.bf16.msra.mxu0 0
    %2412 = vmatprep.mubr.bf16.mxu0 0
    %2413 = vmatmul.mubr.bf16.gmra.mrb[0].mxu0 %v2378
    %v2414 = vpop.f32.mrb[0].mxu0
    %v2415 = vadd.f32 0.0, %v2414
    %v2416 = vpop.f32.mrb[0].mxu0
    %v2417 = vpop.f32.mrb[0].mxu0
    %v2418 = vpop.f32.mrb[0].mxu0
    %2419 = vdwg.mxu0
    %v2420 = vadd.f32 %v2341, %v2415
    %s2421 = scalar_lea.vmem %s5, 192
    %v2422 = vld [vmem:[%s2421] sm:$0xf]
    %v2423 = vld [vmem:[%s2421 + $0x4] sm:$0xf]
    %v2424 = vld [vmem:[%s2421 + $0x8] sm:$0xf]
    %v2425 = vld [vmem:[%s2421 + $0xc] sm:$0xf]
    %v2426 = vld [vmem:[%s2421 + $0x10] sm:$0xf]
    %v2427 = vld [vmem:[%s2421 + $0x14] sm:$0xf]
    %v2428 = vld [vmem:[%s2421 + $0x18] sm:$0xf]
    %v2429 = vld [vmem:[%s2421 + $0x1c] sm:$0xf]
    %v2430 = vrot.slane %v2264, 2
    %v2439 = vunpack.c.l.b16 %v2422
    %v2440 = vunpack.c.l.b16 %v2423
    %v2441 = vunpack.c.l.b16 %v2424
    %v2442 = vunpack.c.l.b16 %v2425
    %v2443 = vunpack.c.l.b16 %v2426
    %v2444 = vunpack.c.l.b16 %v2427
    %v2445 = vunpack.c.l.b16 %v2428
    %v2446 = vunpack.c.l.b16 %v2429
    %v2447 = vpack.c.b16 %v2440, %v2439
    %v2448 = vpack.c.b16 %v2442, %v2441
    %v2449 = vpack.c.b16 %v2444, %v2443
    %v2450 = vpack.c.b16 %v2446, %v2445
    %v2456 = vsel %vm1997, %v2430, 0
    %2458 = vmatprep.subr.bf16.mxu0 0
    %2459 = vmatpush1.bf16.msra.mxu0 %v2447
    %2460 = vmatprep.subr.bf16.mxu0 0
    %2461 = vmatpush1.bf16.msra.mxu0 %v2448
    %2462 = vmatprep.subr.bf16.mxu0 0
    %2463 = vmatpush1.bf16.msra.mxu0 %v2449
    %2464 = vmatprep.subr.bf16.mxu0 0
    %2465 = vmatpush1.bf16.msra.mxu0 %v2450
    %2466 = vmatprep.subr.bf16.mxu0 0
    %2467 = vmatpush1.bf16.msra.mxu0 0
    %2468 = vmatprep.subr.bf16.mxu0 0
    %2469 = vmatpush1.bf16.msra.mxu0 0
    %2470 = vmatprep.subr.bf16.mxu0 0
    %2471 = vmatpush1.bf16.msra.mxu0 0
    %2472 = vmatprep.subr.bf16.mxu0 0
    %2473 = vmatpush1.bf16.msra.mxu0 0
    %2474 = vmatprep.subr.bf16.mxu0 0
    %2475 = vmatpush1.bf16.msra.mxu0 0
    %2476 = vmatprep.subr.bf16.mxu0 0
    %2477 = vmatpush1.bf16.msra.mxu0 0
    %2478 = vmatprep.subr.bf16.mxu0 0
    %2479 = vmatpush1.bf16.msra.mxu0 0
    %2480 = vmatprep.subr.bf16.mxu0 0
    %2481 = vmatpush1.bf16.msra.mxu0 0
    %2482 = vmatprep.subr.bf16.mxu0 0
    %2483 = vmatpush1.bf16.msra.mxu0 0
    %2484 = vmatprep.subr.bf16.mxu0 0
    %2485 = vmatpush1.bf16.msra.mxu0 0
    %2486 = vmatprep.subr.bf16.mxu0 0
    %2487 = vmatpush1.bf16.msra.mxu0 0
    %2488 = vmatprep.subr.bf16.mxu0 0
    %2489 = vmatpush1.bf16.msra.mxu0 0
    %2490 = vmatprep.mubr.bf16.mxu0 0
    %2491 = vmatmul.mubr.bf16.gmra.mrb[0].mxu0 %v2456
    %v2492 = vpop.f32.mrb[0].mxu0
    %v2493 = vadd.f32 0.0, %v2492
    %v2494 = vpop.f32.mrb[0].mxu0
    %v2495 = vpop.f32.mrb[0].mxu0
    %v2496 = vpop.f32.mrb[0].mxu0
    %2497 = vdwg.mxu0
    %v2498 = vadd.f32 %v2420, %v2493
    %s2499 = scalar_lea.vmem %s5, 224
    %v2500 = vld [vmem:[%s2499] sm:$0xf]
    %v2501 = vld [vmem:[%s2499 + $0x4] sm:$0xf]
    %v2502 = vld [vmem:[%s2499 + $0x8] sm:$0xf]
    %v2503 = vld [vmem:[%s2499 + $0xc] sm:$0xf]
    %v2504 = vld [vmem:[%s2499 + $0x10] sm:$0xf]
    %v2505 = vld [vmem:[%s2499 + $0x14] sm:$0xf]
    %v2506 = vld [vmem:[%s2499 + $0x18] sm:$0xf]
    %v2507 = vld [vmem:[%s2499 + $0x1c] sm:$0xf]
    %v2508 = vrot.slane %v2264, 3
    %v2517 = vunpack.c.l.b16 %v2500
    %v2518 = vunpack.c.l.b16 %v2501
    %v2519 = vunpack.c.l.b16 %v2502
    %v2520 = vunpack.c.l.b16 %v2503
    %v2521 = vunpack.c.l.b16 %v2504
    %v2522 = vunpack.c.l.b16 %v2505
    %v2523 = vunpack.c.l.b16 %v2506
    %v2524 = vunpack.c.l.b16 %v2507
    %v2525 = vpack.c.b16 %v2518, %v2517
    %v2526 = vpack.c.b16 %v2520, %v2519
    %v2527 = vpack.c.b16 %v2522, %v2521
    %v2528 = vpack.c.b16 %v2524, %v2523
    %v2534 = vsel %vm1997, %v2508, 0
    %2536 = vmatprep.subr.bf16.mxu0 0
    %2537 = vmatpush1.bf16.msra.mxu0 %v2525
    %2538 = vmatprep.subr.bf16.mxu0 0
    %2539 = vmatpush1.bf16.msra.mxu0 %v2526
    %2540 = vmatprep.subr.bf16.mxu0 0
    %2541 = vmatpush1.bf16.msra.mxu0 %v2527
    %2542 = vmatprep.subr.bf16.mxu0 0
    %2543 = vmatpush1.bf16.msra.mxu0 %v2528
    %2544 = vmatprep.subr.bf16.mxu0 0
    %2545 = vmatpush1.bf16.msra.mxu0 0
    %2546 = vmatprep.subr.bf16.mxu0 0
    %2547 = vmatpush1.bf16.msra.mxu0 0
    %2548 = vmatprep.subr.bf16.mxu0 0
    %2549 = vmatpush1.bf16.msra.mxu0 0
    %2550 = vmatprep.subr.bf16.mxu0 0
    %2551 = vmatpush1.bf16.msra.mxu0 0
    %2552 = vmatprep.subr.bf16.mxu0 0
    %2553 = vmatpush1.bf16.msra.mxu0 0
    %2554 = vmatprep.subr.bf16.mxu0 0
    %2555 = vmatpush1.bf16.msra.mxu0 0
    %2556 = vmatprep.subr.bf16.mxu0 0
    %2557 = vmatpush1.bf16.msra.mxu0 0
    %2558 = vmatprep.subr.bf16.mxu0 0
    %2559 = vmatpush1.bf16.msra.mxu0 0
    %2560 = vmatprep.subr.bf16.mxu0 0
    %2561 = vmatpush1.bf16.msra.mxu0 0
    %2562 = vmatprep.subr.bf16.mxu0 0
    %2563 = vmatpush1.bf16.msra.mxu0 0
    %2564 = vmatprep.subr.bf16.mxu0 0
    %2565 = vmatpush1.bf16.msra.mxu0 0
    %2566 = vmatprep.subr.bf16.mxu0 0
    %2567 = vmatpush1.bf16.msra.mxu0 0
    %2568 = vmatprep.mubr.bf16.mxu0 0
    %2569 = vmatmul.mubr.bf16.gmra.mrb[0].mxu0 %v2534
    %v2570 = vpop.f32.mrb[0].mxu0
    %v2571 = vadd.f32 0.0, %v2570
    %v2572 = vpop.f32.mrb[0].mxu0
    %v2573 = vpop.f32.mrb[0].mxu0
    %v2574 = vpop.f32.mrb[0].mxu0
    %2575 = vdwg.mxu0
    %v2576 = vadd.f32 %v2498, %v2571
    %v2577 = vpack.c.bf16 %v1952, %v1952
    %s2578 = scalar_lea.vmem %s5, 256
    %v2579 = vld [vmem:[%s2578] sm:$0xf]
    %v2580 = vld [vmem:[%s2578 + $0x4] sm:$0xf]
    %v2581 = vld [vmem:[%s2578 + $0x8] sm:$0xf]
    %v2582 = vld [vmem:[%s2578 + $0xc] sm:$0xf]
    %v2583 = vld [vmem:[%s2578 + $0x10] sm:$0xf]
    %v2584 = vld [vmem:[%s2578 + $0x14] sm:$0xf]
    %v2585 = vld [vmem:[%s2578 + $0x18] sm:$0xf]
    %v2586 = vld [vmem:[%s2578 + $0x1c] sm:$0xf]
    %v2595 = vunpack.c.l.b16 %v2579
    %v2596 = vunpack.c.l.b16 %v2580
    %v2597 = vunpack.c.l.b16 %v2581
    %v2598 = vunpack.c.l.b16 %v2582
    %v2599 = vunpack.c.l.b16 %v2583
    %v2600 = vunpack.c.l.b16 %v2584
    %v2601 = vunpack.c.l.b16 %v2585
    %v2602 = vunpack.c.l.b16 %v2586
    %v2603 = vpack.c.b16 %v2596, %v2595
    %v2604 = vpack.c.b16 %v2598, %v2597
    %v2605 = vpack.c.b16 %v2600, %v2599
    %v2606 = vpack.c.b16 %v2602, %v2601
    %v2612 = vsel %vm1997, %v2577, 0
    %2614 = vmatprep.subr.bf16.mxu0 0
    %2615 = vmatpush1.bf16.msra.mxu0 %v2603
    %2616 = vmatprep.subr.bf16.mxu0 0
    %2617 = vmatpush1.bf16.msra.mxu0 %v2604
    %2618 = vmatprep.subr.bf16.mxu0 0
    %2619 = vmatpush1.bf16.msra.mxu0 %v2605
    %2620 = vmatprep.subr.bf16.mxu0 0
    %2621 = vmatpush1.bf16.msra.mxu0 %v2606
    %2622 = vmatprep.subr.bf16.mxu0 0
    %2623 = vmatpush1.bf16.msra.mxu0 0
    %2624 = vmatprep.subr.bf16.mxu0 0
    %2625 = vmatpush1.bf16.msra.mxu0 0
    %2626 = vmatprep.subr.bf16.mxu0 0
    %2627 = vmatpush1.bf16.msra.mxu0 0
    %2628 = vmatprep.subr.bf16.mxu0 0
    %2629 = vmatpush1.bf16.msra.mxu0 0
    %2630 = vmatprep.subr.bf16.mxu0 0
    %2631 = vmatpush1.bf16.msra.mxu0 0
    %2632 = vmatprep.subr.bf16.mxu0 0
    %2633 = vmatpush1.bf16.msra.mxu0 0
    %2634 = vmatprep.subr.bf16.mxu0 0
    %2635 = vmatpush1.bf16.msra.mxu0 0
    %2636 = vmatprep.subr.bf16.mxu0 0
    %2637 = vmatpush1.bf16.msra.mxu0 0
    %2638 = vmatprep.subr.bf16.mxu0 0
    %2639 = vmatpush1.bf16.msra.mxu0 0
    %2640 = vmatprep.subr.bf16.mxu0 0
    %2641 = vmatpush1.bf16.msra.mxu0 0
    %2642 = vmatprep.subr.bf16.mxu0 0
    %2643 = vmatpush1.bf16.msra.mxu0 0
    %2644 = vmatprep.subr.bf16.mxu0 0
    %2645 = vmatpush1.bf16.msra.mxu0 0
    %2646 = vmatprep.mubr.bf16.mxu0 0
    %2647 = vmatmul.mubr.bf16.gmra.mrb[0].mxu0 %v2612
    %v2648 = vpop.f32.mrb[0].mxu0
    %v2649 = vadd.f32 0.0, %v2648
    %v2650 = vpop.f32.mrb[0].mxu0
    %v2651 = vpop.f32.mrb[0].mxu0
    %v2652 = vpop.f32.mrb[0].mxu0
    %2653 = vdwg.mxu0
    %v2654 = vadd.f32 %v2576, %v2649
    %v2655 = vld [vmem:[%s6] sm:$0x1]
    %v2657 = vlaneseq
    %v2658 = vshrl.u32 %v2657, 7
    %v2659 = vsub.s32 0, %v2658
    %v2660 = vrot.slane %v2655, %v2659
    %v2662 = vadd.f32 %v2654, %v2660
    %v2663 = vmax.f32 %v2662, 0.0
    %v2664 = vpack.c.bf16 %v2663, %v2663
    %v2665 = vld [vmem:[%s7] sm:$0xf]
    %v2666 = vld [vmem:[%s7 + $0x4] sm:$0xf]
    %v2667 = vld [vmem:[%s7 + $0x8] sm:$0xf]
    %v2668 = vld [vmem:[%s7 + $0xc] sm:$0xf]
    %v2669 = vld [vmem:[%s7 + $0x10] sm:$0xf]
    %v2670 = vld [vmem:[%s7 + $0x14] sm:$0xf]
    %v2671 = vld [vmem:[%s7 + $0x18] sm:$0xf]
    %v2672 = vld [vmem:[%s7 + $0x1c] sm:$0xf]
    %v2673 = vld [vmem:[%s8] sm:$0x1]
    %v2675 = vlaneseq
    %v2676 = vshrl.u32 %v2675, 7
    %v2677 = vsub.s32 0, %v2676
    %v2678 = vrot.slane %v2673, %v2677
    %v2688 = vunpack.c.l.b16 %v2665
    %v2689 = vunpack.c.l.b16 %v2666
    %v2690 = vunpack.c.l.b16 %v2667
    %v2691 = vunpack.c.l.b16 %v2668
    %v2692 = vunpack.c.l.b16 %v2669
    %v2693 = vunpack.c.l.b16 %v2670
    %v2694 = vunpack.c.l.b16 %v2671
    %v2695 = vunpack.c.l.b16 %v2672
    %v2696 = vpack.c.b16 %v2689, %v2688
    %v2697 = vpack.c.b16 %v2691, %v2690
    %v2698 = vpack.c.b16 %v2693, %v2692
    %v2699 = vpack.c.b16 %v2695, %v2694
    %v2705 = vsel %vm1997, %v2664, 0
    %2707 = vmatprep.subr.bf16.mxu0 0
    %2708 = vmatpush1.bf16.msra.mxu0 %v2696
    %2709 = vmatprep.subr.bf16.mxu0 0
    %2710 = vmatpush1.bf16.msra.mxu0 %v2697
    %2711 = vmatprep.subr.bf16.mxu0 0
    %2712 = vmatpush1.bf16.msra.mxu0 %v2698
    %2713 = vmatprep.subr.bf16.mxu0 0
    %2714 = vmatpush1.bf16.msra.mxu0 %v2699
    %2715 = vmatprep.subr.bf16.mxu0 0
    %2716 = vmatpush1.bf16.msra.mxu0 0
    %2717 = vmatprep.subr.bf16.mxu0 0
    %2718 = vmatpush1.bf16.msra.mxu0 0
    %2719 = vmatprep.subr.bf16.mxu0 0
    %2720 = vmatpush1.bf16.msra.mxu0 0
    %2721 = vmatprep.subr.bf16.mxu0 0
    %2722 = vmatpush1.bf16.msra.mxu0 0
    %2723 = vmatprep.subr.bf16.mxu0 0
    %2724 = vmatpush1.bf16.msra.mxu0 0
    %2725 = vmatprep.subr.bf16.mxu0 0
    %2726 = vmatpush1.bf16.msra.mxu0 0
    %2727 = vmatprep.subr.bf16.mxu0 0
    %2728 = vmatpush1.bf16.msra.mxu0 0
    %2729 = vmatprep.subr.bf16.mxu0 0
    %2730 = vmatpush1.bf16.msra.mxu0 0
    %2731 = vmatprep.subr.bf16.mxu0 0
    %2732 = vmatpush1.bf16.msra.mxu0 0
    %2733 = vmatprep.subr.bf16.mxu0 0
    %2734 = vmatpush1.bf16.msra.mxu0 0
    %2735 = vmatprep.subr.bf16.mxu0 0
    %2736 = vmatpush1.bf16.msra.mxu0 0
    %2737 = vmatprep.subr.bf16.mxu0 0
    %2738 = vmatpush1.bf16.msra.mxu0 0
    %2739 = vmatprep.mubr.bf16.mxu0 0
    %2740 = vmatmul.mubr.bf16.gmra.mrb[0].mxu0 %v2705
    %v2741 = vpop.f32.mrb[0].mxu0
    %v2742 = vadd.f32 %v2678, %v2741
    %v2743 = vpop.f32.mrb[0].mxu0
    %v2744 = vpop.f32.mrb[0].mxu0
    %v2745 = vpop.f32.mrb[0].mxu0
    %2746 = vdwg.mxu0
    %v2747 = vmax.f32 %v2742, 0.0
    %vm2748 = vcmask 254976
    %2749 = vst.msk [vmem:[#allocation2] sm:$0x3] %vm2748, %v2747
    // Predicated region
    $region38: #{cnn_forward.1} parent=1 // pred_check
      _
    $region39: #{cnn_forward.1} parent=1 // pred_check_branch
      %2751 = sbr.rel (0) target = $region41
    $region40: #{cnn_forward.1} parent=1 // pred_region
      %s2753 = ssub.s32 32, 32
      %2754 = vsyncadd [#allocation3], %s2753
      %s2756 = sshll.u32 [#allocation2], 4
      %s2757 = int_to_ptr.vmem [resolvable:$true] %s2756
      %2759 = dma.vmem_to_hbm [thread:$0]  %s2757, 32, %s9, [#allocation3]
    $region41: #{cnn_forward.1} parent=1 // pred_fallthru
      _
    // Predicated region
    $region42: #{cnn_forward.1} parent=1 // pred_check
      _
    $region43: #{cnn_forward.1} parent=1 // pred_check_branch
      %2761 = sbr.rel (0) target = $region45
    $region44: #{cnn_forward.1} parent=1 // pred_region
      %2762 = dma.done [#allocation3], 32
    $region45: #{cnn_forward.1} parent=1 // pred_fallthru
      _
    %2763 = vsyncpa [#allocation3], 1

</llo_original>
